<compile_context>
chip_gen: v7x
topology: tpu7x:2x2x1
jax: 0.10.0
libtpu: 0.0.40
codegen_flags: <defaults>
</compile_context>

<pallas_src>
import math

import jax
import jax.numpy as jnp
from jax import lax
from jax.experimental import pallas as pl
from jax.experimental.pallas import tpu as pltpu

LN_EPS = 1e-12  # reference custom LayerNorm: biased variance, eps=1e-12


# --------------------------------------------------------------------------
# Fused multi-head attention + residual + LayerNorm (one kernel per batch)
# --------------------------------------------------------------------------

def mha_ln_pallas(attn_p, norm_p, q_in, kv_in, mask, n_head):
    """out = LayerNorm( MHA(q_in, kv_in, kv_in, mask) + q_in ).

    q_in : (B, Lq, D) f32     kv_in : (B, Lk, D) f32
    mask : (B, Lq, Lk) int32  (0 == masked, matches masked_fill(mask==0,-1e4))
    """
    B, Lq, D = q_in.shape
    Lk = kv_in.shape[1]
    dh = D // n_head
    scale = 1.0 / math.sqrt(dh)

    wq = attn_p["wq"]
    bq = attn_p["bq"].reshape(1, D)
    wkv = attn_p["wkv"]                     # (D, 2D) fused K|V projection
    bkv = attn_p["bkv"].reshape(1, 2 * D)
    wo = attn_p["wo"]
    bo = attn_p["bo"].reshape(1, D)
    gamma = norm_p["g"].reshape(1, D)
    beta = norm_p["b"].reshape(1, D)

    def kern(q_ref, kv_ref, m_ref, wq_ref, bq_ref, wkv_ref, bkv_ref,
             wo_ref, bo_ref, g_ref, beta_ref, o_ref):
        xq = q_ref[0]                        # (Lq, D) f32
        xkv = kv_ref[0]                      # (Lk, D) f32

        # Fused projections (bf16 MXU inputs, f32 accumulation).
        q = jnp.dot(xq.astype(jnp.bfloat16), wq_ref[...].astype(jnp.bfloat16),
                    preferred_element_type=jnp.float32) + bq_ref[...]
        kv = jnp.dot(xkv.astype(jnp.bfloat16), wkv_ref[...].astype(jnp.bfloat16),
                     preferred_element_type=jnp.float32) + bkv_ref[...]
        k = kv[:, :D]
        v = kv[:, D:]

        mask_b = m_ref[0]                    # (Lq, Lk) int32, shared by heads

        head_outs = []
        for h in range(n_head):              # static unrolled head loop
            sl = slice(h * dh, (h + 1) * dh)
            qh = q[:, sl].astype(jnp.bfloat16)
            kh = k[:, sl].astype(jnp.bfloat16)
            vh = v[:, sl].astype(jnp.bfloat16)
            # q @ k^T without an explicit transpose (contract last dims).
            s = lax.dot_general(qh, kh, (((1,), (1,)), ((), ())),
                                preferred_element_type=jnp.float32) * scale
            s = jnp.where(mask_b == 0, -10000.0, s)
            s = s - jnp.max(s, axis=-1, keepdims=True)
            p = jnp.exp(s)
            p = p * pl.reciprocal(jnp.sum(p, axis=-1, keepdims=True),
                                  approx=True)
            head_outs.append(
                jnp.dot(p.astype(jnp.bfloat16), vh,
                        preferred_element_type=jnp.float32))
        ctx = jnp.concatenate(head_outs, axis=-1)            # (Lq, D)

        proj = jnp.dot(ctx.astype(jnp.bfloat16),
                       wo_ref[...].astype(jnp.bfloat16),
                       preferred_element_type=jnp.float32) + bo_ref[...]

        # residual add + LayerNorm (biased var, eps=1e-12), all f32.
        h2 = proj + xq
        mean = jnp.mean(h2, axis=-1, keepdims=True)
        var = jnp.mean((h2 - mean) ** 2, axis=-1, keepdims=True)
        o_ref[0] = ((h2 - mean) * lax.rsqrt(var + LN_EPS)
                    * g_ref[...] + beta_ref[...])

    return pl.pallas_call(
        kern,
        out_shape=jax.ShapeDtypeStruct((B, Lq, D), jnp.float32),
        grid=(B,),
        in_specs=[
            pl.BlockSpec((1, Lq, D), lambda b: (b, 0, 0)),
            pl.BlockSpec((1, Lk, D), lambda b: (b, 0, 0)),
            pl.BlockSpec((1, Lq, Lk), lambda b: (b, 0, 0)),
            pl.BlockSpec((D, D), lambda b: (0, 0)),
            pl.BlockSpec((1, D), lambda b: (0, 0)),
            pl.BlockSpec((D, 2 * D), lambda b: (0, 0)),
            pl.BlockSpec((1, 2 * D), lambda b: (0, 0)),
            pl.BlockSpec((D, D), lambda b: (0, 0)),
            pl.BlockSpec((1, D), lambda b: (0, 0)),
            pl.BlockSpec((1, D), lambda b: (0, 0)),
            pl.BlockSpec((1, D), lambda b: (0, 0)),
        ],
        out_specs=pl.BlockSpec((1, Lq, D), lambda b: (b, 0, 0)),
        compiler_params=pltpu.CompilerParams(
            dimension_semantics=("parallel",)),
    )(q_in, kv_in, mask, wq, bq, wkv, bkv, wo, bo, gamma, beta)


# --------------------------------------------------------------------------
# Fused FFN (w1 + ReLU + w2) + residual + LayerNorm (one kernel per batch)
# --------------------------------------------------------------------------

def ffn_ln_pallas(ffn_p, norm_p, x):
    B, L, D = x.shape
    F = ffn_p["w1"].shape[1]
    w1 = ffn_p["w1"]
    b1 = ffn_p["b1"].reshape(1, F)
    w2 = ffn_p["w2"]
    b2 = ffn_p["b2"].reshape(1, D)
    gamma = norm_p["g"].reshape(1, D)
    beta = norm_p["b"].reshape(1, D)

    def kern(x_ref, w1_ref, b1_ref, w2_ref, b2_ref, g_ref, beta_ref, o_ref):
        xb = x_ref[0]                                          # (L, D)
        h = jnp.dot(xb.astype(jnp.bfloat16), w1_ref[...].astype(jnp.bfloat16),
                    preferred_element_type=jnp.float32) + b1_ref[...]
        h = jnp.maximum(h, 0.0)
        y = jnp.dot(h.astype(jnp.bfloat16), w2_ref[...].astype(jnp.bfloat16),
                    preferred_element_type=jnp.float32) + b2_ref[...]
        h2 = y + xb
        mean = jnp.mean(h2, axis=-1, keepdims=True)
        var = jnp.mean((h2 - mean) ** 2, axis=-1, keepdims=True)
        o_ref[0] = ((h2 - mean) * lax.rsqrt(var + LN_EPS)
                    * g_ref[...] + beta_ref[...])

    return pl.pallas_call(
        kern,
        out_shape=jax.ShapeDtypeStruct((B, L, D), jnp.float32),
        grid=(B,),
        in_specs=[
            pl.BlockSpec((1, L, D), lambda b: (b, 0, 0)),
            pl.BlockSpec((D, F), lambda b: (0, 0)),
            pl.BlockSpec((1, F), lambda b: (0, 0)),
            pl.BlockSpec((F, D), lambda b: (0, 0)),
            pl.BlockSpec((1, D), lambda b: (0, 0)),
            pl.BlockSpec((1, D), lambda b: (0, 0)),
            pl.BlockSpec((1, D), lambda b: (0, 0)),
        ],
        out_specs=pl.BlockSpec((1, L, D), lambda b: (b, 0, 0)),
        compiler_params=pltpu.CompilerParams(
            dimension_semantics=("parallel",)),
    )(x, w1, b1, w2, b2, gamma, beta)


# --------------------------------------------------------------------------
# Tiled matmul kernel (final vocab projection) with K-axis accumulator
# --------------------------------------------------------------------------

def linear_pallas(x, w, b, *, tm=128, tn=128, tk=512):
    """y = x @ w + b, tiled with an f32 VMEM accumulator over K."""
    M, K = x.shape
    N = w.shape[1]
    tm = min(tm, M)
    tn = min(tn, N)
    tk = min(tk, K)
    assert M % tm == 0 and N % tn == 0 and K % tk == 0, "pick divisible tiles"

    def kern(x_ref, w_ref, b_ref, o_ref, acc_ref):
        @pl.when(pl.program_id(2) == 0)
        def _():
            acc_ref[...] = jnp.zeros_like(acc_ref)

        acc_ref[...] += jnp.dot(x_ref[...].astype(jnp.bfloat16),
                                w_ref[...].astype(jnp.bfloat16),
                                preferred_element_type=jnp.float32)

        @pl.when(pl.program_id(2) == pl.num_programs(2) - 1)
        def _():
            o_ref[...] = acc_ref[...] + b_ref[...]

    return pl.pallas_call(
        kern,
        out_shape=jax.ShapeDtypeStruct((M, N), jnp.float32),
        grid=(pl.cdiv(M, tm), pl.cdiv(N, tn), pl.cdiv(K, tk)),
        in_specs=[
            pl.BlockSpec((tm, tk), lambda i, j, k: (i, k)),
            pl.BlockSpec((tk, tn), lambda i, j, k: (k, j)),
            pl.BlockSpec((1, tn), lambda i, j, k: (0, j)),
        ],
        out_specs=pl.BlockSpec((tm, tn), lambda i, j, k: (i, j)),
        scratch_shapes=[pltpu.VMEM((tm, tn), jnp.float32)],
        compiler_params=pltpu.CompilerParams(
            dimension_semantics=("parallel", "parallel", "arbitrary")),
    )(x, w, b.reshape(1, N))


# --------------------------------------------------------------------------
# Model glue (embedding gather, masks) in plain JAX, whole forward jitted
# --------------------------------------------------------------------------

def transformer_embedding(tok_table, pos_table, tokens):
    L = tokens.shape[1]
    emb = tok_table[tokens]                       # (B, L, D) gather
    return emb + pos_table[:L][None, :, :]        # dropout == identity (eval)


def make_masks(src, trg, src_pad_idx, trg_pad_idx):
    B, Ls = src.shape
    Lt = trg.shape[1]
    src_keep = (src != src_pad_idx)                               # (B, Ls)
    enc_self = jnp.broadcast_to(src_keep[:, None, :], (B, Ls, Ls))
    cross = jnp.broadcast_to(src_keep[:, None, :], (B, Lt, Ls))
    trg_keep = (trg != trg_pad_idx)                               # (B, Lt)
    tril = jnp.tril(jnp.ones((Lt, Lt), dtype=bool))
    trg_self = trg_keep[:, :, None] & tril[None, :, :]
    return (enc_self.astype(jnp.int32),
            cross.astype(jnp.int32),
            trg_self.astype(jnp.int32))


def transformer_forward(params, src, trg, cfg):
    n_head = cfg["n_head"]
    enc_mask, cross_mask, trg_mask = make_masks(
        src, trg, cfg["src_pad_idx"], cfg["trg_pad_idx"])

    # Encoder
    x = transformer_embedding(params["enc"]["tok"], params["pos"], src)
    for lp in params["enc"]["layers"]:
        x = mha_ln_pallas(lp["attn"], lp["norm1"], x, x, enc_mask, n_head)
        x = ffn_ln_pallas(lp["ffn"], lp["norm2"], x)
    enc_src = x

    # Decoder
    y = transformer_embedding(params["dec"]["tok"], params["pos"], trg)
    for lp in params["dec"]["layers"]:
        y = mha_ln_pallas(lp["self_attn"], lp["norm1"], y, y, trg_mask, n_head)
        y = mha_ln_pallas(lp["cross_attn"], lp["norm2"], y, enc_src,
                          cross_mask, n_head)
        y = ffn_ln_pallas(lp["ffn"], lp["norm3"], y)

    B, Lt, D = y.shape
    out = linear_pallas(y.reshape(B * Lt, D),
                        params["dec"]["w_out"], params["dec"]["b_out"])
    return out.reshape(B, Lt, -1)


# --------------------------------------------------------------------------
# Deterministic parameter initialization
# --------------------------------------------------------------------------

class KeyGen:
    def __init__(self, key):
        self.key = key

    def __call__(self):
        self.key, sub = jax.random.split(self.key)
        return sub


def init_linear(kg, fan_in, fan_out):
    bound = 1.0 / math.sqrt(fan_in)
    w = jax.random.uniform(kg(), (fan_in, fan_out), jnp.float32, -bound, bound)
    b = jax.random.uniform(kg(), (fan_out,), jnp.float32, -bound, bound)
    return w, b


def init_attn(kg, d_model):
    wq, bq = init_linear(kg, d_model, d_model)
    wk, bk = init_linear(kg, d_model, d_model)
    wv, bv = init_linear(kg, d_model, d_model)
    wo, bo = init_linear(kg, d_model, d_model)
    # fuse K|V projection; store matmul weights bf16 (f32 accumulate in-kernel)
    return {"wq": wq.astype(jnp.bfloat16), "bq": bq,
            "wkv": jnp.concatenate([wk, wv], axis=1).astype(jnp.bfloat16),
            "bkv": jnp.concatenate([bk, bv], axis=0),
            "wo": wo.astype(jnp.bfloat16), "bo": bo}


def init_norm(d_model):
    return {"g": jnp.ones((d_model,), jnp.float32),
            "b": jnp.zeros((d_model,), jnp.float32)}


def init_ffn(kg, d_model, hidden):
    w1, b1 = init_linear(kg, d_model, hidden)
    w2, b2 = init_linear(kg, hidden, d_model)
    return {"w1": w1.astype(jnp.bfloat16), "b1": b1,
            "w2": w2.astype(jnp.bfloat16), "b2": b2}


def init_embedding(kg, voc, d_model, padding_idx=1):
    tab = jax.random.normal(kg(), (voc, d_model), jnp.float32)
    return tab.at[padding_idx].set(0.0)   # nn.Embedding(padding_idx=1)


def sinusoidal_pos(max_len, d_model):
    pos = jnp.arange(max_len, dtype=jnp.float32)[:, None]
    two_i = jnp.arange(0, d_model, 2, dtype=jnp.float32)
    div = jnp.power(10000.0, two_i / d_model)
    enc = jnp.zeros((max_len, d_model), jnp.float32)
    enc = enc.at[:, 0::2].set(jnp.sin(pos / div))
    enc = enc.at[:, 1::2].set(jnp.cos(pos / div))
    return enc


def init_params(key, cfg):
    kg = KeyGen(key)
    d_model, n_layers = cfg["d_model"], cfg["n_layers"]
    ffn_hidden = cfg["ffn_hidden"]

    enc_layers = []
    for _ in range(n_layers):
        enc_layers.append({"attn": init_attn(kg, d_model),
                           "norm1": init_norm(d_model),
                           "ffn": init_ffn(kg, d_model, ffn_hidden),
                           "norm2": init_norm(d_model)})

    dec_layers = []
    for _ in range(n_layers):
        dec_layers.append({"self_attn": init_attn(kg, d_model),
                           "norm1": init_norm(d_model),
                           "cross_attn": init_attn(kg, d_model),
                           "norm2": init_norm(d_model),
                           "ffn": init_ffn(kg, d_model, ffn_hidden),
                           "norm3": init_norm(d_model)})

    w_out, b_out = init_linear(kg, d_model, cfg["dec_voc_size"])

    return {
        "pos": sinusoidal_pos(cfg["max_len"], d_model),
        "enc": {"tok": init_embedding(kg, cfg["enc_voc_size"], d_model),
                "layers": enc_layers},
        "dec": {"tok": init_embedding(kg, cfg["dec_voc_size"], d_model),
                "layers": dec_layers,
                "w_out": w_out.astype(jnp.bfloat16), "b_out": b_out},
    }


# --------------------------------------------------------------------------

if __name__ == "__main__":
    # Lane-dense config: d_model / ffn_hidden / vocab multiples of 128.
    cfg = dict(
        src_pad_idx=1, trg_pad_idx=1, trg_sos_idx=2,
        enc_voc_size=128, dec_voc_size=128,
        d_model=128, n_head=4, max_len=16,
        ffn_hidden=256, n_layers=2, drop_prob=0.1,
    )
    B, Ls, Lt = 2, 8, 8

    key = jax.random.PRNGKey(0)
    k_param, k_src, k_trg = jax.random.split(key, 3)

    params = init_params(k_param, cfg)

    src = jax.random.randint(k_src, (B, Ls), 3, cfg["enc_voc_size"], dtype=jnp.int32)
    trg = jax.random.randint(k_trg, (B, Lt), 3, cfg["dec_voc_size"], dtype=jnp.int32)
    # introduce some padding tokens so the masks actually do something
    src = src.at[0, -2:].set(cfg["src_pad_idx"])
    trg = trg.at[1, -3:].set(cfg["trg_pad_idx"])
    trg = trg.at[:, 0].set(cfg["trg_sos_idx"])

    fwd = jax.jit(lambda p, s, t: transformer_forward(p, s, t, cfg))
    out = fwd(params, src, trg)
    out = jax.block_until_ready(out)

    assert out.shape == (B, Lt, cfg["dec_voc_size"])
    assert jnp.all(jnp.isfinite(out))
    print("KERNEL_OK")
</pallas_src>

<mosaic_0001>
module attributes {stable_mosaic.version = 11 : i64} {
  func.func @kern(%arg0: i32, %arg1: memref<1x8x128xf32, #tpu.memory_space<vmem>>, %arg2: memref<128x256xbf16, #tpu.memory_space<vmem>>, %arg3: memref<1x256xf32, #tpu.memory_space<vmem>>, %arg4: memref<256x128xbf16, #tpu.memory_space<vmem>>, %arg5: memref<1x128xf32, #tpu.memory_space<vmem>>, %arg6: memref<1x128xf32, #tpu.memory_space<vmem>>, %arg7: memref<1x128xf32, #tpu.memory_space<vmem>>, %arg8: memref<1x8x128xf32, #tpu.memory_space<vmem>>) attributes {dimension_semantics = [#tpu.dimension_semantics<parallel>], iteration_bounds = array<i64: 2>, scalar_prefetch = 0 : i64, scratch_operands = 0 : i64, tpu.core_type = #tpu.core_type<tc>, window_params = [{transform_indices = @transform_0, window_bounds = array<i64: 1, 8, 128>}, {pipeline_mode = #tpu.pipeline_mode<synchronous>, transform_indices = @transform_1, window_bounds = array<i64: 128, 256>}, {pipeline_mode = #tpu.pipeline_mode<synchronous>, transform_indices = @transform_2, window_bounds = array<i64: 1, 256>}, {pipeline_mode = #tpu.pipeline_mode<synchronous>, transform_indices = @transform_3, window_bounds = array<i64: 256, 128>}, {pipeline_mode = #tpu.pipeline_mode<synchronous>, transform_indices = @transform_4, window_bounds = array<i64: 1, 128>}, {pipeline_mode = #tpu.pipeline_mode<synchronous>, transform_indices = @transform_5, window_bounds = array<i64: 1, 128>}, {pipeline_mode = #tpu.pipeline_mode<synchronous>, transform_indices = @transform_6, window_bounds = array<i64: 1, 128>}, {transform_indices = @transform_7, window_bounds = array<i64: 1, 8, 128>}]} {
    %c0 = arith.constant 0 : index
    %c0_0 = arith.constant 0 : index
    %c0_1 = arith.constant 0 : index
    %0 = vector.load %arg1[%c0, %c0_0, %c0_1] : memref<1x8x128xf32, #tpu.memory_space<vmem>>, vector<1x8x128xf32>
    %1 = vector.shape_cast %0 : vector<1x8x128xf32> to vector<8x128xf32>
    %2 = arith.truncf %1 : vector<8x128xf32> to vector<8x128xbf16>
    %c0_2 = arith.constant 0 : index
    %c0_3 = arith.constant 0 : index
    %3 = vector.load %arg2[%c0_2, %c0_3] : memref<128x256xbf16, #tpu.memory_space<vmem>>, vector<128x256xbf16>
    %cst = arith.constant dense<0.000000e+00> : vector<8x256xf32>
    %4 = tpu.matmul %2, %3, %cst {dimension_numbers = #tpu.dot_dimension_numbers<[1], [0], [0], [1], [0, 0, 1, 1], [], []>} : vector<8x128xbf16>, vector<128x256xbf16>, vector<8x256xf32> -> vector<8x256xf32>
    %c0_4 = arith.constant 0 : index
    %c0_5 = arith.constant 0 : index
    %5 = vector.load %arg3[%c0_4, %c0_5] : memref<1x256xf32, #tpu.memory_space<vmem>>, vector<1x256xf32>
    %6 = vector.broadcast %5 : vector<1x256xf32> to vector<8x256xf32>
    %7 = arith.addf %4, %6 : vector<8x256xf32>
    %cst_6 = arith.constant 0.000000e+00 : f32
    %8 = vector.broadcast %cst_6 : f32 to vector<8x256xf32>
    %9 = arith.maximumf %7, %8 : vector<8x256xf32>
    %10 = arith.truncf %9 : vector<8x256xf32> to vector<8x256xbf16>
    %c0_7 = arith.constant 0 : index
    %c0_8 = arith.constant 0 : index
    %11 = vector.load %arg4[%c0_7, %c0_8] : memref<256x128xbf16, #tpu.memory_space<vmem>>, vector<256x128xbf16>
    %cst_9 = arith.constant dense<0.000000e+00> : vector<8x128xf32>
    %12 = tpu.matmul %10, %11, %cst_9 {dimension_numbers = #tpu.dot_dimension_numbers<[1], [0], [0], [1], [0, 0, 1, 1], [], []>} : vector<8x256xbf16>, vector<256x128xbf16>, vector<8x128xf32> -> vector<8x128xf32>
    %c0_10 = arith.constant 0 : index
    %c0_11 = arith.constant 0 : index
    %13 = vector.load %arg5[%c0_10, %c0_11] : memref<1x128xf32, #tpu.memory_space<vmem>>, vector<1x128xf32>
    %14 = vector.broadcast %13 : vector<1x128xf32> to vector<8x128xf32>
    %15 = arith.addf %12, %14 : vector<8x128xf32>
    %16 = arith.addf %15, %1 : vector<8x128xf32>
    %cst_12 = arith.constant dense<0.000000e+00> : vector<8xf32>
    %17 = vector.multi_reduction <add>, %16, %cst_12 [1] : vector<8x128xf32> to vector<8xf32>
    %18 = vector.shape_cast %17 : vector<8xf32> to vector<8x1xf32>
    %cst_13 = arith.constant 1.280000e+02 : f32
    %19 = vector.broadcast %cst_13 : f32 to vector<8x1xf32>
    %20 = arith.divf %18, %19 : vector<8x1xf32>
    %21 = vector.broadcast %20 : vector<8x1xf32> to vector<8x128xf32>
    %22 = arith.subf %16, %21 : vector<8x128xf32>
    %23 = arith.mulf %22, %22 : vector<8x128xf32>
    %cst_14 = arith.constant dense<0.000000e+00> : vector<8xf32>
    %24 = vector.multi_reduction <add>, %23, %cst_14 [1] : vector<8x128xf32> to vector<8xf32>
    %25 = vector.shape_cast %24 : vector<8xf32> to vector<8x1xf32>
    %cst_15 = arith.constant 1.280000e+02 : f32
    %26 = vector.broadcast %cst_15 : f32 to vector<8x1xf32>
    %27 = arith.divf %25, %26 : vector<8x1xf32>
    %28 = vector.broadcast %20 : vector<8x1xf32> to vector<8x128xf32>
    %29 = arith.subf %16, %28 : vector<8x128xf32>
    %cst_16 = arith.constant 9.99999996E-13 : f32
    %30 = vector.broadcast %cst_16 : f32 to vector<8x1xf32>
    %31 = arith.addf %27, %30 : vector<8x1xf32>
    %32 = math.rsqrt %31 : vector<8x1xf32>
    %33 = vector.broadcast %32 : vector<8x1xf32> to vector<8x128xf32>
    %34 = arith.mulf %29, %33 : vector<8x128xf32>
    %c0_17 = arith.constant 0 : index
    %c0_18 = arith.constant 0 : index
    %35 = vector.load %arg6[%c0_17, %c0_18] : memref<1x128xf32, #tpu.memory_space<vmem>>, vector<1x128xf32>
    %36 = vector.broadcast %35 : vector<1x128xf32> to vector<8x128xf32>
    %37 = arith.mulf %34, %36 : vector<8x128xf32>
    %c0_19 = arith.constant 0 : index
    %c0_20 = arith.constant 0 : index
    %38 = vector.load %arg7[%c0_19, %c0_20] : memref<1x128xf32, #tpu.memory_space<vmem>>, vector<1x128xf32>
    %39 = vector.broadcast %38 : vector<1x128xf32> to vector<8x128xf32>
    %40 = arith.addf %37, %39 : vector<8x128xf32>
    %c0_21 = arith.constant 0 : index
    %c0_22 = arith.constant 0 : index
    %c0_23 = arith.constant 0 : index
    %41 = vector.load %arg8[%c0_21, %c0_22, %c0_23] : memref<1x8x128xf32, #tpu.memory_space<vmem>>, vector<1x8x128xf32>
    %42 = vector.shape_cast %41 : vector<1x8x128xf32> to vector<8x128xf32>
    %43 = vector.shape_cast %40 : vector<8x128xf32> to vector<1x8x128xf32>
    tpu.vector_store %arg8[%c0_21, %c0_22, %c0_23], %43 {strides = array<i32>} : memref<1x8x128xf32, #tpu.memory_space<vmem>>, vector<1x8x128xf32>,
    return
  }
  func.func @transform_0(%arg0: i32) -> (i32, i32, i32) {
    %c0_i32 = arith.constant 0 : i32
    %c0_i32_0 = arith.constant 0 : i32
    %c0_i32_1 = arith.constant 0 : i32
    return %arg0, %c0_i32, %c0_i32_0 : i32, i32, i32
  }
  func.func @transform_1(%arg0: i32) -> (i32, i32) {
    %c0_i32 = arith.constant 0 : i32
    %c0_i32_0 = arith.constant 0 : i32
    %c0_i32_1 = arith.constant 0 : i32
    return %c0_i32, %c0_i32_0 : i32, i32
  }
  func.func @transform_2(%arg0: i32) -> (i32, i32) {
    %c0_i32 = arith.constant 0 : i32
    %c0_i32_0 = arith.constant 0 : i32
    %c0_i32_1 = arith.constant 0 : i32
    return %c0_i32, %c0_i32_0 : i32, i32
  }
  func.func @transform_3(%arg0: i32) -> (i32, i32) {
    %c0_i32 = arith.constant 0 : i32
    %c0_i32_0 = arith.constant 0 : i32
    %c0_i32_1 = arith.constant 0 : i32
    return %c0_i32, %c0_i32_0 : i32, i32
  }
  func.func @transform_4(%arg0: i32) -> (i32, i32) {
    %c0_i32 = arith.constant 0 : i32
    %c0_i32_0 = arith.constant 0 : i32
    %c0_i32_1 = arith.constant 0 : i32
    return %c0_i32, %c0_i32_0 : i32, i32
  }
  func.func @transform_5(%arg0: i32) -> (i32, i32) {
    %c0_i32 = arith.constant 0 : i32
    %c0_i32_0 = arith.constant 0 : i32
    %c0_i32_1 = arith.constant 0 : i32
    return %c0_i32, %c0_i32_0 : i32, i32
  }
  func.func @transform_6(%arg0: i32) -> (i32, i32) {
    %c0_i32 = arith.constant 0 : i32
    %c0_i32_0 = arith.constant 0 : i32
    %c0_i32_1 = arith.constant 0 : i32
    return %c0_i32, %c0_i32_0 : i32, i32
  }
  func.func @transform_7(%arg0: i32) -> (i32, i32, i32) {
    %c0_i32 = arith.constant 0 : i32
    %c0_i32_0 = arith.constant 0 : i32
    %c0_i32_1 = arith.constant 0 : i32
    return %arg0, %c0_i32, %c0_i32_0 : i32, i32, i32
  }
}

module attributes {stable_mosaic.version = 11 : i64} {
  func.func @kern(%arg0: i32, %arg1: i32, %arg2: i32, %arg3: memref<16x128xf32, #tpu.memory_space<vmem>>, %arg4: memref<128x128xbf16, #tpu.memory_space<vmem>>, %arg5: memref<1x128xf32, #tpu.memory_space<vmem>>, %arg6: memref<16x128xf32, #tpu.memory_space<vmem>>, %arg7: memref<16x128xf32, #tpu.memory_space<vmem>>) attributes {dimension_semantics = [#tpu.dimension_semantics<parallel>, #tpu.dimension_semantics<parallel>, #tpu.dimension_semantics<arbitrary>], iteration_bounds = array<i64: 1, 1, 1>, scalar_prefetch = 0 : i64, scratch_operands = 1 : i64, tpu.core_type = #tpu.core_type<tc>, window_params = [{transform_indices = @transform_0, window_bounds = array<i64: 16, 128>}, {transform_indices = @transform_1, window_bounds = array<i64: 128, 128>}, {transform_indices = @transform_2, window_bounds = array<i64: 1, 128>}, {transform_indices = @transform_3, window_bounds = array<i64: 16, 128>}]} {
    %c0_i32 = arith.constant 0 : i32
    %0 = arith.cmpi eq, %arg2, %c0_i32 : i32
    %1 = arith.extui %0 : i1 to i32
    %c0_i32_0 = arith.constant 0 : i32
    %2 = arith.cmpi ne, %1, %c0_i32_0 : i32
    scf.if %2 {
      %cst_10 = arith.constant 0.000000e+00 : f32
      %13 = vector.broadcast %cst_10 : f32 to vector<16x128xf32>
      %c0_11 = arith.constant 0 : index
      %c0_12 = arith.constant 0 : index
      %14 = vector.load %arg7[%c0_11, %c0_12] : memref<16x128xf32, #tpu.memory_space<vmem>>, vector<16x128xf32>
      tpu.vector_store %arg7[%c0_11, %c0_12], %13 {strides = array<i32>} : memref<16x128xf32, #tpu.memory_space<vmem>>, vector<16x128xf32>,
    } else {
    }
    %c0 = arith.constant 0 : index
    %c0_1 = arith.constant 0 : index
    %3 = vector.load %arg7[%c0, %c0_1] : memref<16x128xf32, #tpu.memory_space<vmem>>, vector<16x128xf32>
    %c0_2 = arith.constant 0 : index
    %c0_3 = arith.constant 0 : index
    %4 = vector.load %arg3[%c0_2, %c0_3] : memref<16x128xf32, #tpu.memory_space<vmem>>, vector<16x128xf32>
    %5 = arith.truncf %4 : vector<16x128xf32> to vector<16x128xbf16>
    %c0_4 = arith.constant 0 : index
    %c0_5 = arith.constant 0 : index
    %6 = vector.load %arg4[%c0_4, %c0_5] : memref<128x128xbf16, #tpu.memory_space<vmem>>, vector<128x128xbf16>
    %cst = arith.constant dense<0.000000e+00> : vector<16x128xf32>
    %7 = tpu.matmul %5, %6, %cst {dimension_numbers = #tpu.dot_dimension_numbers<[1], [0], [0], [1], [0, 0, 1, 1], [], []>} : vector<16x128xbf16>, vector<128x128xbf16>, vector<16x128xf32> -> vector<16x128xf32>
    %8 = arith.addf %3, %7 : vector<16x128xf32>
    %c0_6 = arith.constant 0 : index
    %c0_7 = arith.constant 0 : index
    %9 = vector.load %arg7[%c0_6, %c0_7] : memref<16x128xf32, #tpu.memory_space<vmem>>, vector<16x128xf32>
    tpu.vector_store %arg7[%c0_6, %c0_7], %8 {strides = array<i32>} : memref<16x128xf32, #tpu.memory_space<vmem>>, vector<16x128xf32>,
    %c0_i32_8 = arith.constant 0 : i32
    %10 = arith.cmpi eq, %arg2, %c0_i32_8 : i32
    %11 = arith.extui %10 : i1 to i32
    %c0_i32_9 = arith.constant 0 : i32
    %12 = arith.cmpi ne, %11, %c0_i32_9 : i32
    scf.if %12 {
      %c0_10 = arith.constant 0 : index
      %c0_11 = arith.constant 0 : index
      %13 = vector.load %arg7[%c0_10, %c0_11] : memref<16x128xf32, #tpu.memory_space<vmem>>, vector<16x128xf32>
      %c0_12 = arith.constant 0 : index
      %c0_13 = arith.constant 0 : index
      %14 = vector.load %arg5[%c0_12, %c0_13] : memref<1x128xf32, #tpu.memory_space<vmem>>, vector<1x128xf32>
      %15 = vector.broadcast %14 : vector<1x128xf32> to vector<16x128xf32>
      %16 = arith.addf %13, %15 : vector<16x128xf32>
      %c0_14 = arith.constant 0 : index
      %c0_15 = arith.constant 0 : index
      %17 = vector.load %arg6[%c0_14, %c0_15] : memref<16x128xf32, #tpu.memory_space<vmem>>, vector<16x128xf32>
      tpu.vector_store %arg6[%c0_14, %c0_15], %16 {strides = array<i32>} : memref<16x128xf32, #tpu.memory_space<vmem>>, vector<16x128xf32>,
    } else {
    }
    return
  }
  func.func @transform_0(%arg0: i32, %arg1: i32, %arg2: i32) -> (i32, i32) {
    %c0_i32 = arith.constant 0 : i32
    return %arg0, %arg2 : i32, i32
  }
  func.func @transform_1(%arg0: i32, %arg1: i32, %arg2: i32) -> (i32, i32) {
    %c0_i32 = arith.constant 0 : i32
    return %arg2, %arg1 : i32, i32
  }
  func.func @transform_2(%arg0: i32, %arg1: i32, %arg2: i32) -> (i32, i32) {
    %c0_i32 = arith.constant 0 : i32
    %c0_i32_0 = arith.constant 0 : i32
    return %c0_i32, %arg1 : i32, i32
  }
  func.func @transform_3(%arg0: i32, %arg1: i32, %arg2: i32) -> (i32, i32) {
    %c0_i32 = arith.constant 0 : i32
    return %arg0, %arg1 : i32, i32
  }
}

module attributes {stable_mosaic.version = 11 : i64} {
  func.func @kern(%arg0: i32, %arg1: memref<1x8x128xf32, #tpu.memory_space<vmem>>, %arg2: memref<1x8x128xf32, #tpu.memory_space<vmem>>, %arg3: memref<1x8x8xi32, #tpu.memory_space<vmem>>, %arg4: memref<128x128xbf16, #tpu.memory_space<vmem>>, %arg5: memref<1x128xf32, #tpu.memory_space<vmem>>, %arg6: memref<128x256xbf16, #tpu.memory_space<vmem>>, %arg7: memref<1x256xf32, #tpu.memory_space<vmem>>, %arg8: memref<128x128xbf16, #tpu.memory_space<vmem>>, %arg9: memref<1x128xf32, #tpu.memory_space<vmem>>, %arg10: memref<1x128xf32, #tpu.memory_space<vmem>>, %arg11: memref<1x128xf32, #tpu.memory_space<vmem>>, %arg12: memref<1x8x128xf32, #tpu.memory_space<vmem>>) attributes {dimension_semantics = [#tpu.dimension_semantics<parallel>], iteration_bounds = array<i64: 2>, scalar_prefetch = 0 : i64, scratch_operands = 0 : i64, tpu.core_type = #tpu.core_type<tc>, window_params = [{transform_indices = @transform_0, window_bounds = array<i64: 1, 8, 128>}, {transform_indices = @transform_1, window_bounds = array<i64: 1, 8, 128>}, {transform_indices = @transform_2, window_bounds = array<i64: 1, 8, 8>}, {pipeline_mode = #tpu.pipeline_mode<synchronous>, transform_indices = @transform_3, window_bounds = array<i64: 128, 128>}, {pipeline_mode = #tpu.pipeline_mode<synchronous>, transform_indices = @transform_4, window_bounds = array<i64: 1, 128>}, {pipeline_mode = #tpu.pipeline_mode<synchronous>, transform_indices = @transform_5, window_bounds = array<i64: 128, 256>}, {pipeline_mode = #tpu.pipeline_mode<synchronous>, transform_indices = @transform_6, window_bounds = array<i64: 1, 256>}, {pipeline_mode = #tpu.pipeline_mode<synchronous>, transform_indices = @transform_7, window_bounds = array<i64: 128, 128>}, {pipeline_mode = #tpu.pipeline_mode<synchronous>, transform_indices = @transform_8, window_bounds = array<i64: 1, 128>}, {pipeline_mode = #tpu.pipeline_mode<synchronous>, transform_indices = @transform_9, window_bounds = array<i64: 1, 128>}, {pipeline_mode = #tpu.pipeline_mode<synchronous>, transform_indices = @transform_10, window_bounds = array<i64: 1, 128>}, {transform_indices = @transform_11, window_bounds = array<i64: 1, 8, 128>}]} {
    %c0 = arith.constant 0 : index
    %c0_0 = arith.constant 0 : index
    %c0_1 = arith.constant 0 : index
    %0 = vector.load %arg1[%c0, %c0_0, %c0_1] : memref<1x8x128xf32, #tpu.memory_space<vmem>>, vector<1x8x128xf32>
    %1 = vector.shape_cast %0 : vector<1x8x128xf32> to vector<8x128xf32>
    %c0_2 = arith.constant 0 : index
    %c0_3 = arith.constant 0 : index
    %c0_4 = arith.constant 0 : index
    %2 = vector.load %arg2[%c0_2, %c0_3, %c0_4] : memref<1x8x128xf32, #tpu.memory_space<vmem>>, vector<1x8x128xf32>
    %3 = vector.shape_cast %2 : vector<1x8x128xf32> to vector<8x128xf32>
    %4 = arith.truncf %1 : vector<8x128xf32> to vector<8x128xbf16>
    %c0_5 = arith.constant 0 : index
    %c0_6 = arith.constant 0 : index
    %5 = vector.load %arg4[%c0_5, %c0_6] : memref<128x128xbf16, #tpu.memory_space<vmem>>, vector<128x128xbf16>
    %cst = arith.constant dense<0.000000e+00> : vector<8x128xf32>
    %6 = tpu.matmul %4, %5, %cst {dimension_numbers = #tpu.dot_dimension_numbers<[1], [0], [0], [1], [0, 0, 1, 1], [], []>} : vector<8x128xbf16>, vector<128x128xbf16>, vector<8x128xf32> -> vector<8x128xf32>
    %c0_7 = arith.constant 0 : index
    %c0_8 = arith.constant 0 : index
    %7 = vector.load %arg5[%c0_7, %c0_8] : memref<1x128xf32, #tpu.memory_space<vmem>>, vector<1x128xf32>
    %8 = vector.broadcast %7 : vector<1x128xf32> to vector<8x128xf32>
    %9 = arith.addf %6, %8 : vector<8x128xf32>
    %10 = arith.truncf %3 : vector<8x128xf32> to vector<8x128xbf16>
    %c0_9 = arith.constant 0 : index
    %c0_10 = arith.constant 0 : index
    %11 = vector.load %arg6[%c0_9, %c0_10] : memref<128x256xbf16, #tpu.memory_space<vmem>>, vector<128x256xbf16>
    %cst_11 = arith.constant dense<0.000000e+00> : vector<8x256xf32>
    %12 = tpu.matmul %10, %11, %cst_11 {dimension_numbers = #tpu.dot_dimension_numbers<[1], [0], [0], [1], [0, 0, 1, 1], [], []>} : vector<8x128xbf16>, vector<128x256xbf16>, vector<8x256xf32> -> vector<8x256xf32>
    %c0_12 = arith.constant 0 : index
    %c0_13 = arith.constant 0 : index
    %13 = vector.load %arg7[%c0_12, %c0_13] : memref<1x256xf32, #tpu.memory_space<vmem>>, vector<1x256xf32>
    %14 = vector.broadcast %13 : vector<1x256xf32> to vector<8x256xf32>
    %15 = arith.addf %12, %14 : vector<8x256xf32>
    %16 = vector.extract_strided_slice %15 {offsets = [0, 0], sizes = [8, 128], strides = [1, 1]} : vector<8x256xf32> to vector<8x128xf32>
    %17 = vector.extract_strided_slice %15 {offsets = [0, 128], sizes = [8, 128], strides = [1, 1]} : vector<8x256xf32> to vector<8x128xf32>
    %c0_14 = arith.constant 0 : index
    %c0_15 = arith.constant 0 : index
    %c0_16 = arith.constant 0 : index
    %18 = vector.load %arg3[%c0_14, %c0_15, %c0_16] : memref<1x8x8xi32, #tpu.memory_space<vmem>>, vector<1x8x8xi32>
    %19 = vector.shape_cast %18 : vector<1x8x8xi32> to vector<8x8xi32>
    %20 = vector.extract_strided_slice %9 {offsets = [0, 0], sizes = [8, 32], strides = [1, 1]} : vector<8x128xf32> to vector<8x32xf32>
    %21 = arith.truncf %20 : vector<8x32xf32> to vector<8x32xbf16>
    %22 = vector.extract_strided_slice %16 {offsets = [0, 0], sizes = [8, 32], strides = [1, 1]} : vector<8x128xf32> to vector<8x32xf32>
    %23 = arith.truncf %22 : vector<8x32xf32> to vector<8x32xbf16>
    %24 = vector.extract_strided_slice %17 {offsets = [0, 0], sizes = [8, 32], strides = [1, 1]} : vector<8x128xf32> to vector<8x32xf32>
    %25 = arith.truncf %24 : vector<8x32xf32> to vector<8x32xbf16>
    %cst_17 = arith.constant dense<0.000000e+00> : vector<8x8xf32>
    %26 = tpu.matmul %21, %23, %cst_17 {dimension_numbers = #tpu.dot_dimension_numbers<[1], [1], [0], [0], [0, 0, 1, 0], [], []>} : vector<8x32xbf16>, vector<8x32xbf16>, vector<8x8xf32> -> vector<8x8xf32>
    %cst_18 = arith.constant 0.176776692 : f32
    %27 = vector.broadcast %cst_18 : f32 to vector<8x8xf32>
    %28 = arith.mulf %26, %27 : vector<8x8xf32>
    %c0_i32 = arith.constant 0 : i32
    %29 = vector.broadcast %c0_i32 : i32 to vector<8x8xi32>
    %30 = arith.cmpi eq, %19, %29 : vector<8x8xi32>
    %cst_19 = arith.constant -1.000000e+04 : f32
    %31 = vector.broadcast %cst_19 : f32 to vector<8x8xf32>
    %32 = arith.select %30, %31, %28 : vector<8x8xi1>, vector<8x8xf32>
    %cst_20 = arith.constant dense<0xFF800000> : vector<8xf32>
    %33 = vector.multi_reduction <maximumf>, %32, %cst_20 [1] : vector<8x8xf32> to vector<8xf32>
    %34 = vector.shape_cast %33 : vector<8xf32> to vector<8x1xf32>
    %35 = vector.broadcast %34 : vector<8x1xf32> to vector<8x8xf32>
    %36 = arith.subf %32, %35 : vector<8x8xf32>
    %37 = math.exp %36 : vector<8x8xf32>
    %cst_21 = arith.constant dense<0.000000e+00> : vector<8xf32>
    %38 = vector.multi_reduction <add>, %37, %cst_21 [1] : vector<8x8xf32> to vector<8xf32>
    %39 = vector.shape_cast %38 : vector<8xf32> to vector<8x1xf32>
    %40 = tpu.reciprocal %39 {approx = true} : vector<8x1xf32> -> vector<8x1xf32>
    %41 = vector.broadcast %40 : vector<8x1xf32> to vector<8x8xf32>
    %42 = arith.mulf %37, %41 : vector<8x8xf32>
    %43 = arith.truncf %42 : vector<8x8xf32> to vector<8x8xbf16>
    %cst_22 = arith.constant dense<0.000000e+00> : vector<8x32xf32>
    %44 = tpu.matmul %43, %25, %cst_22 {dimension_numbers = #tpu.dot_dimension_numbers<[1], [0], [0], [1], [0, 0, 1, 1], [], []>} : vector<8x8xbf16>, vector<8x32xbf16>, vector<8x32xf32> -> vector<8x32xf32>
    %45 = vector.extract_strided_slice %9 {offsets = [0, 32], sizes = [8, 32], strides = [1, 1]} : vector<8x128xf32> to vector<8x32xf32>
    %46 = arith.truncf %45 : vector<8x32xf32> to vector<8x32xbf16>
    %47 = vector.extract_strided_slice %16 {offsets = [0, 32], sizes = [8, 32], strides = [1, 1]} : vector<8x128xf32> to vector<8x32xf32>
    %48 = arith.truncf %47 : vector<8x32xf32> to vector<8x32xbf16>
    %49 = vector.extract_strided_slice %17 {offsets = [0, 32], sizes = [8, 32], strides = [1, 1]} : vector<8x128xf32> to vector<8x32xf32>
    %50 = arith.truncf %49 : vector<8x32xf32> to vector<8x32xbf16>
    %cst_23 = arith.constant dense<0.000000e+00> : vector<8x8xf32>
    %51 = tpu.matmul %46, %48, %cst_23 {dimension_numbers = #tpu.dot_dimension_numbers<[1], [1], [0], [0], [0, 0, 1, 0], [], []>} : vector<8x32xbf16>, vector<8x32xbf16>, vector<8x8xf32> -> vector<8x8xf32>
    %cst_24 = arith.constant 0.176776692 : f32
    %52 = vector.broadcast %cst_24 : f32 to vector<8x8xf32>
    %53 = arith.mulf %51, %52 : vector<8x8xf32>
    %c0_i32_25 = arith.constant 0 : i32
    %54 = vector.broadcast %c0_i32_25 : i32 to vector<8x8xi32>
    %55 = arith.cmpi eq, %19, %54 : vector<8x8xi32>
    %cst_26 = arith.constant -1.000000e+04 : f32
    %56 = vector.broadcast %cst_26 : f32 to vector<8x8xf32>
    %57 = arith.select %55, %56, %53 : vector<8x8xi1>, vector<8x8xf32>
    %cst_27 = arith.constant dense<0xFF800000> : vector<8xf32>
    %58 = vector.multi_reduction <maximumf>, %57, %cst_27 [1] : vector<8x8xf32> to vector<8xf32>
    %59 = vector.shape_cast %58 : vector<8xf32> to vector<8x1xf32>
    %60 = vector.broadcast %59 : vector<8x1xf32> to vector<8x8xf32>
    %61 = arith.subf %57, %60 : vector<8x8xf32>
    %62 = math.exp %61 : vector<8x8xf32>
    %cst_28 = arith.constant dense<0.000000e+00> : vector<8xf32>
    %63 = vector.multi_reduction <add>, %62, %cst_28 [1] : vector<8x8xf32> to vector<8xf32>
    %64 = vector.shape_cast %63 : vector<8xf32> to vector<8x1xf32>
    %65 = tpu.reciprocal %64 {approx = true} : vector<8x1xf32> -> vector<8x1xf32>
    %66 = vector.broadcast %65 : vector<8x1xf32> to vector<8x8xf32>
    %67 = arith.mulf %62, %66 : vector<8x8xf32>
    %68 = arith.truncf %67 : vector<8x8xf32> to vector<8x8xbf16>
    %cst_29 = arith.constant dense<0.000000e+00> : vector<8x32xf32>
    %69 = tpu.matmul %68, %50, %cst_29 {dimension_numbers = #tpu.dot_dimension_numbers<[1], [0], [0], [1], [0, 0, 1, 1], [], []>} : vector<8x8xbf16>, vector<8x32xbf16>, vector<8x32xf32> -> vector<8x32xf32>
    %70 = vector.extract_strided_slice %9 {offsets = [0, 64], sizes = [8, 32], strides = [1, 1]} : vector<8x128xf32> to vector<8x32xf32>
    %71 = arith.truncf %70 : vector<8x32xf32> to vector<8x32xbf16>
    %72 = vector.extract_strided_slice %16 {offsets = [0, 64], sizes = [8, 32], strides = [1, 1]} : vector<8x128xf32> to vector<8x32xf32>
    %73 = arith.truncf %72 : vector<8x32xf32> to vector<8x32xbf16>
    %74 = vector.extract_strided_slice %17 {offsets = [0, 64], sizes = [8, 32], strides = [1, 1]} : vector<8x128xf32> to vector<8x32xf32>
    %75 = arith.truncf %74 : vector<8x32xf32> to vector<8x32xbf16>
    %cst_30 = arith.constant dense<0.000000e+00> : vector<8x8xf32>
    %76 = tpu.matmul %71, %73, %cst_30 {dimension_numbers = #tpu.dot_dimension_numbers<[1], [1], [0], [0], [0, 0, 1, 0], [], []>} : vector<8x32xbf16>, vector<8x32xbf16>, vector<8x8xf32> -> vector<8x8xf32>
    %cst_31 = arith.constant 0.176776692 : f32
    %77 = vector.broadcast %cst_31 : f32 to vector<8x8xf32>
    %78 = arith.mulf %76, %77 : vector<8x8xf32>
    %c0_i32_32 = arith.constant 0 : i32
    %79 = vector.broadcast %c0_i32_32 : i32 to vector<8x8xi32>
    %80 = arith.cmpi eq, %19, %79 : vector<8x8xi32>
    %cst_33 = arith.constant -1.000000e+04 : f32
    %81 = vector.broadcast %cst_33 : f32 to vector<8x8xf32>
    %82 = arith.select %80, %81, %78 : vector<8x8xi1>, vector<8x8xf32>
    %cst_34 = arith.constant dense<0xFF800000> : vector<8xf32>
    %83 = vector.multi_reduction <maximumf>, %82, %cst_34 [1] : vector<8x8xf32> to vector<8xf32>
    %84 = vector.shape_cast %83 : vector<8xf32> to vector<8x1xf32>
    %85 = vector.broadcast %84 : vector<8x1xf32> to vector<8x8xf32>
    %86 = arith.subf %82, %85 : vector<8x8xf32>
    %87 = math.exp %86 : vector<8x8xf32>
    %cst_35 = arith.constant dense<0.000000e+00> : vector<8xf32>
    %88 = vector.multi_reduction <add>, %87, %cst_35 [1] : vector<8x8xf32> to vector<8xf32>
    %89 = vector.shape_cast %88 : vector<8xf32> to vector<8x1xf32>
    %90 = tpu.reciprocal %89 {approx = true} : vector<8x1xf32> -> vector<8x1xf32>
    %91 = vector.broadcast %90 : vector<8x1xf32> to vector<8x8xf32>
    %92 = arith.mulf %87, %91 : vector<8x8xf32>
    %93 = arith.truncf %92 : vector<8x8xf32> to vector<8x8xbf16>
    %cst_36 = arith.constant dense<0.000000e+00> : vector<8x32xf32>
    %94 = tpu.matmul %93, %75, %cst_36 {dimension_numbers = #tpu.dot_dimension_numbers<[1], [0], [0], [1], [0, 0, 1, 1], [], []>} : vector<8x8xbf16>, vector<8x32xbf16>, vector<8x32xf32> -> vector<8x32xf32>
    %95 = vector.extract_strided_slice %9 {offsets = [0, 96], sizes = [8, 32], strides = [1, 1]} : vector<8x128xf32> to vector<8x32xf32>
    %96 = arith.truncf %95 : vector<8x32xf32> to vector<8x32xbf16>
    %97 = vector.extract_strided_slice %16 {offsets = [0, 96], sizes = [8, 32], strides = [1, 1]} : vector<8x128xf32> to vector<8x32xf32>
    %98 = arith.truncf %97 : vector<8x32xf32> to vector<8x32xbf16>
    %99 = vector.extract_strided_slice %17 {offsets = [0, 96], sizes = [8, 32], strides = [1, 1]} : vector<8x128xf32> to vector<8x32xf32>
    %100 = arith.truncf %99 : vector<8x32xf32> to vector<8x32xbf16>
    %cst_37 = arith.constant dense<0.000000e+00> : vector<8x8xf32>
    %101 = tpu.matmul %96, %98, %cst_37 {dimension_numbers = #tpu.dot_dimension_numbers<[1], [1], [0], [0], [0, 0, 1, 0], [], []>} : vector<8x32xbf16>, vector<8x32xbf16>, vector<8x8xf32> -> vector<8x8xf32>
    %cst_38 = arith.constant 0.176776692 : f32
    %102 = vector.broadcast %cst_38 : f32 to vector<8x8xf32>
    %103 = arith.mulf %101, %102 : vector<8x8xf32>
    %c0_i32_39 = arith.constant 0 : i32
    %104 = vector.broadcast %c0_i32_39 : i32 to vector<8x8xi32>
    %105 = arith.cmpi eq, %19, %104 : vector<8x8xi32>
    %cst_40 = arith.constant -1.000000e+04 : f32
    %106 = vector.broadcast %cst_40 : f32 to vector<8x8xf32>
    %107 = arith.select %105, %106, %103 : vector<8x8xi1>, vector<8x8xf32>
    %cst_41 = arith.constant dense<0xFF800000> : vector<8xf32>
    %108 = vector.multi_reduction <maximumf>, %107, %cst_41 [1] : vector<8x8xf32> to vector<8xf32>
    %109 = vector.shape_cast %108 : vector<8xf32> to vector<8x1xf32>
    %110 = vector.broadcast %109 : vector<8x1xf32> to vector<8x8xf32>
    %111 = arith.subf %107, %110 : vector<8x8xf32>
    %112 = math.exp %111 : vector<8x8xf32>
    %cst_42 = arith.constant dense<0.000000e+00> : vector<8xf32>
    %113 = vector.multi_reduction <add>, %112, %cst_42 [1] : vector<8x8xf32> to vector<8xf32>
    %114 = vector.shape_cast %113 : vector<8xf32> to vector<8x1xf32>
    %115 = tpu.reciprocal %114 {approx = true} : vector<8x1xf32> -> vector<8x1xf32>
    %116 = vector.broadcast %115 : vector<8x1xf32> to vector<8x8xf32>
    %117 = arith.mulf %112, %116 : vector<8x8xf32>
    %118 = arith.truncf %117 : vector<8x8xf32> to vector<8x8xbf16>
    %cst_43 = arith.constant dense<0.000000e+00> : vector<8x32xf32>
    %119 = tpu.matmul %118, %100, %cst_43 {dimension_numbers = #tpu.dot_dimension_numbers<[1], [0], [0], [1], [0, 0, 1, 1], [], []>} : vector<8x8xbf16>, vector<8x32xbf16>, vector<8x32xf32> -> vector<8x32xf32>
    %120 = tpu.concatenate %44, %69, %94, %119 in 1 : vector<8x32xf32>, vector<8x32xf32>, vector<8x32xf32>, vector<8x32xf32> -> vector<8x128xf32>
    %121 = arith.truncf %120 : vector<8x128xf32> to vector<8x128xbf16>
    %c0_44 = arith.constant 0 : index
    %c0_45 = arith.constant 0 : index
    %122 = vector.load %arg8[%c0_44, %c0_45] : memref<128x128xbf16, #tpu.memory_space<vmem>>, vector<128x128xbf16>
    %cst_46 = arith.constant dense<0.000000e+00> : vector<8x128xf32>
    %123 = tpu.matmul %121, %122, %cst_46 {dimension_numbers = #tpu.dot_dimension_numbers<[1], [0], [0], [1], [0, 0, 1, 1], [], []>} : vector<8x128xbf16>, vector<128x128xbf16>, vector<8x128xf32> -> vector<8x128xf32>
    %c0_47 = arith.constant 0 : index
    %c0_48 = arith.constant 0 : index
    %124 = vector.load %arg9[%c0_47, %c0_48] : memref<1x128xf32, #tpu.memory_space<vmem>>, vector<1x128xf32>
    %125 = vector.broadcast %124 : vector<1x128xf32> to vector<8x128xf32>
    %126 = arith.addf %123, %125 : vector<8x128xf32>
    %127 = arith.addf %126, %1 : vector<8x128xf32>
    %cst_49 = arith.constant dense<0.000000e+00> : vector<8xf32>
    %128 = vector.multi_reduction <add>, %127, %cst_49 [1] : vector<8x128xf32> to vector<8xf32>
    %129 = vector.shape_cast %128 : vector<8xf32> to vector<8x1xf32>
    %cst_50 = arith.constant 1.280000e+02 : f32
    %130 = vector.broadcast %cst_50 : f32 to vector<8x1xf32>
    %131 = arith.divf %129, %130 : vector<8x1xf32>
    %132 = vector.broadcast %131 : vector<8x1xf32> to vector<8x128xf32>
    %133 = arith.subf %127, %132 : vector<8x128xf32>
    %134 = arith.mulf %133, %133 : vector<8x128xf32>
    %cst_51 = arith.constant dense<0.000000e+00> : vector<8xf32>
    %135 = vector.multi_reduction <add>, %134, %cst_51 [1] : vector<8x128xf32> to vector<8xf32>
    %136 = vector.shape_cast %135 : vector<8xf32> to vector<8x1xf32>
    %cst_52 = arith.constant 1.280000e+02 : f32
    %137 = vector.broadcast %cst_52 : f32 to vector<8x1xf32>
    %138 = arith.divf %136, %137 : vector<8x1xf32>
    %139 = vector.broadcast %131 : vector<8x1xf32> to vector<8x128xf32>
    %140 = arith.subf %127, %139 : vector<8x128xf32>
    %cst_53 = arith.constant 9.99999996E-13 : f32
    %141 = vector.broadcast %cst_53 : f32 to vector<8x1xf32>
    %142 = arith.addf %138, %141 : vector<8x1xf32>
    %143 = math.rsqrt %142 : vector<8x1xf32>
    %144 = vector.broadcast %143 : vector<8x1xf32> to vector<8x128xf32>
    %145 = arith.mulf %140, %144 : vector<8x128xf32>
    %c0_54 = arith.constant 0 : index
    %c0_55 = arith.constant 0 : index
    %146 = vector.load %arg10[%c0_54, %c0_55] : memref<1x128xf32, #tpu.memory_space<vmem>>, vector<1x128xf32>
    %147 = vector.broadcast %146 : vector<1x128xf32> to vector<8x128xf32>
    %148 = arith.mulf %145, %147 : vector<8x128xf32>
    %c0_56 = arith.constant 0 : index
    %c0_57 = arith.constant 0 : index
    %149 = vector.load %arg11[%c0_56, %c0_57] : memref<1x128xf32, #tpu.memory_space<vmem>>, vector<1x128xf32>
    %150 = vector.broadcast %149 : vector<1x128xf32> to vector<8x128xf32>
    %151 = arith.addf %148, %150 : vector<8x128xf32>
    %c0_58 = arith.constant 0 : index
    %c0_59 = arith.constant 0 : index
    %c0_60 = arith.constant 0 : index
    %152 = vector.load %arg12[%c0_58, %c0_59, %c0_60] : memref<1x8x128xf32, #tpu.memory_space<vmem>>, vector<1x8x128xf32>
    %153 = vector.shape_cast %152 : vector<1x8x128xf32> to vector<8x128xf32>
    %154 = vector.shape_cast %151 : vector<8x128xf32> to vector<1x8x128xf32>
    tpu.vector_store %arg12[%c0_58, %c0_59, %c0_60], %154 {strides = array<i32>} : memref<1x8x128xf32, #tpu.memory_space<vmem>>, vector<1x8x128xf32>,
    return
  }
  func.func @transform_0(%arg0: i32) -> (i32, i32, i32) {
    %c0_i32 = arith.constant 0 : i32
    %c0_i32_0 = arith.constant 0 : i32
    %c0_i32_1 = arith.constant 0 : i32
    return %arg0, %c0_i32, %c0_i32_0 : i32, i32, i32
  }
  func.func @transform_1(%arg0: i32) -> (i32, i32, i32) {
    %c0_i32 = arith.constant 0 : i32
    %c0_i32_0 = arith.constant 0 : i32
    %c0_i32_1 = arith.constant 0 : i32
    return %arg0, %c0_i32, %c0_i32_0 : i32, i32, i32
  }
  func.func @transform_2(%arg0: i32) -> (i32, i32, i32) {
    %c0_i32 = arith.constant 0 : i32
    %c0_i32_0 = arith.constant 0 : i32
    %c0_i32_1 = arith.constant 0 : i32
    return %arg0, %c0_i32, %c0_i32_0 : i32, i32, i32
  }
  func.func @transform_3(%arg0: i32) -> (i32, i32) {
    %c0_i32 = arith.constant 0 : i32
    %c0_i32_0 = arith.constant 0 : i32
    %c0_i32_1 = arith.constant 0 : i32
    return %c0_i32, %c0_i32_0 : i32, i32
  }
  func.func @transform_4(%arg0: i32) -> (i32, i32) {
    %c0_i32 = arith.constant 0 : i32
    %c0_i32_0 = arith.constant 0 : i32
    %c0_i32_1 = arith.constant 0 : i32
    return %c0_i32, %c0_i32_0 : i32, i32
  }
  func.func @transform_5(%arg0: i32) -> (i32, i32) {
    %c0_i32 = arith.constant 0 : i32
    %c0_i32_0 = arith.constant 0 : i32
    %c0_i32_1 = arith.constant 0 : i32
    return %c0_i32, %c0_i32_0 : i32, i32
  }
  func.func @transform_6(%arg0: i32) -> (i32, i32) {
    %c0_i32 = arith.constant 0 : i32
    %c0_i32_0 = arith.constant 0 : i32
    %c0_i32_1 = arith.constant 0 : i32
    return %c0_i32, %c0_i32_0 : i32, i32
  }
  func.func @transform_7(%arg0: i32) -> (i32, i32) {
    %c0_i32 = arith.constant 0 : i32
    %c0_i32_0 = arith.constant 0 : i32
    %c0_i32_1 = arith.constant 0 : i32
    return %c0_i32, %c0_i32_0 : i32, i32
  }
  func.func @transform_8(%arg0: i32) -> (i32, i32) {
    %c0_i32 = arith.constant 0 : i32
    %c0_i32_0 = arith.constant 0 : i32
    %c0_i32_1 = arith.constant 0 : i32
    return %c0_i32, %c0_i32_0 : i32, i32
  }
  func.func @transform_9(%arg0: i32) -> (i32, i32) {
    %c0_i32 = arith.constant 0 : i32
    %c0_i32_0 = arith.constant 0 : i32
    %c0_i32_1 = arith.constant 0 : i32
    return %c0_i32, %c0_i32_0 : i32, i32
  }
  func.func @transform_10(%arg0: i32) -> (i32, i32) {
    %c0_i32 = arith.constant 0 : i32
    %c0_i32_0 = arith.constant 0 : i32
    %c0_i32_1 = arith.constant 0 : i32
    return %c0_i32, %c0_i32_0 : i32, i32
  }
  func.func @transform_11(%arg0: i32) -> (i32, i32, i32) {
    %c0_i32 = arith.constant 0 : i32
    %c0_i32_0 = arith.constant 0 : i32
    %c0_i32_1 = arith.constant 0 : i32
    return %arg0, %c0_i32, %c0_i32_0 : i32, i32, i32
  }
}

</mosaic_0001>

<llo_original>
// kernel: _lambda_.12
$region0: #{_lambda_.12}
  #allocation0 [shape = 'u32[]', space=smem, size = 0x4, offset = 0x4, fixed_abs, tag = 'smem constant byte address 0x4 - core index']
  #allocation1 [shape = 'u32[144,128]{1,0:T(1,128)}', space=vmem, size = 0x12000, scoped, tag = 'internal scratch']
  %s0 = inlined_call_operand.vmem [shape: f32[2,8,128], index: 0, kind: input, shape index: {}]
  %s1 = inlined_call_operand.vmem [shape: bf16[128,256], index: 1, kind: input, shape index: {}]
  %s2 = inlined_call_operand.vmem [shape: f32[1,256], index: 2, kind: input, shape index: {}]
  %s3 = inlined_call_operand.vmem [shape: bf16[256,128], index: 3, kind: input, shape index: {}]
  %s4 = inlined_call_operand.vmem [shape: f32[1,128], index: 4, kind: input, shape index: {}]
  %s5 = inlined_call_operand.vmem [shape: f32[1,128], index: 5, kind: input, shape index: {}]
  %s6 = inlined_call_operand.vmem [shape: f32[1,128], index: 6, kind: input, shape index: {}]
  %s7 = inlined_call_operand.vmem [shape: f32[2,8,128], index: 7, kind: output, shape index: {}]
  %s8 = sld [smem:[#allocation0]]
  $region61: #{_lambda_.12} parent=0
    _
  %s10 = ssub.s32 1, %s8
  %s11 = scalar_select 0, %s10, %s8
  loop: start=0, step=1, limit=4
  $region2: #{_lambda_.12} parent=0 // loop_pre_header
    _
  $region3: #{_lambda_.12} parent=0 // loop_header
    %s13 = sphi 0, %s17
    %p14 = scmp.ge.s32.totalorder %s13, 4
    %s23 = sphi 0, %s25
    %s26 = sphi 0, %s23
    %s27 = sphi 0, %s26
    %s43 = sphi 0, %s27
    %s47 = sphi 0, %s47
    %s49 = sphi 0, %s47
    %s50 = sphi 0, %s49
    %s64 = sphi 0, %s50
    %s68 = sphi 0, %s68
    %s70 = sphi 0, %s68
    %s71 = sphi 0, %s70
    %s85 = sphi 0, %s71
    %s89 = sphi 0, %s89
    %s91 = sphi 0, %s89
    %s92 = sphi 0, %s91
    %s106 = sphi 0, %s92
    %s110 = sphi 0, %s110
    %s112 = sphi 0, %s110
    %s113 = sphi 0, %s112
    %s127 = sphi 0, %s113
    %s131 = sphi 0, %s131
    %s133 = sphi 0, %s131
    %s134 = sphi 0, %s133
    %s148 = sphi 0, %s134
    %s152 = sphi 0, %s152
    %s154 = sphi 0, %s152
    %s155 = sphi 0, %s154
    %s169 = sphi 0, %s155
    %s175 = sphi 0, %s177
    %s178 = sphi 0, %s175
    %s179 = sphi 0, %s178
    %s195 = sphi 0, %s179
  $region4: #{_lambda_.12} parent=0 // loop_header_branch
    %16 = sbr.rel (%p14) target = $region8
  $region5: #{_lambda_.12} parent=0 // loop_body
    %s18 = ssub.s32 %s13, 1
    %s19 = ssub.s32 %s13, 2
    %s20 = sadd.s32 %s13, 1
    %s21 = ssub.s32 %s13, %s20
    %p22 = scmp.eq.s32.totalorder %s21, 0
    %s24 = sadd.s32 %s23, 1
    %s25 = scalar_select %p22, %s23, %s24
    %p28 = pneg %p22
    %p29 = scmp.eq.s32.totalorder %s13, 1
    %p30 = por %p28, %p29
    %p31 = scmp.ne.s32.totalorder %s23, %s26
    %p32 = scmp.eq.s32.totalorder %s13, 0
    %p33 = por %p31, %p32
    %p34 = scmp.ne.s32.totalorder %s23, %s26
    %p35 = scmp.eq.s32.totalorder %s18, 1
    %p36 = por %p34, %p35
    %p37 = scmp.ne.s32.totalorder %s26, %s27
    %p38 = scmp.eq.s32.totalorder %s18, 0
    %p39 = por %p37, %p38
    %p40 = scmp.ne.s32.totalorder %s26, %s27
    %p41 = scmp.eq.s32.totalorder %s19, 1
    %p42 = por %p40, %p41
    %p44 = scmp.ne.s32.totalorder %s27, %s43
    %p45 = scmp.eq.s32.totalorder %s19, 0
    %p46 = por %p44, %p45
    %s48 = sadd.s32 %s47, 1
    %p51 = scmp.eq.s32.totalorder %s13, 1
    %p52 = scmp.ne.s32.totalorder %s47, %s49
    %p53 = scmp.eq.s32.totalorder %s13, 0
    %p54 = por %p52, %p53
    %p55 = scmp.ne.s32.totalorder %s47, %s49
    %p56 = scmp.eq.s32.totalorder %s18, 1
    %p57 = por %p55, %p56
    %p58 = scmp.ne.s32.totalorder %s49, %s50
    %p59 = scmp.eq.s32.totalorder %s18, 0
    %p60 = por %p58, %p59
    %p61 = scmp.ne.s32.totalorder %s49, %s50
    %p62 = scmp.eq.s32.totalorder %s19, 1
    %p63 = por %p61, %p62
    %p65 = scmp.ne.s32.totalorder %s50, %s64
    %p66 = scmp.eq.s32.totalorder %s19, 0
    %p67 = por %p65, %p66
    %s69 = sadd.s32 %s68, 1
    %p72 = scmp.eq.s32.totalorder %s13, 1
    %p73 = scmp.ne.s32.totalorder %s68, %s70
    %p74 = scmp.eq.s32.totalorder %s13, 0
    %p75 = por %p73, %p74
    %p76 = scmp.ne.s32.totalorder %s68, %s70
    %p77 = scmp.eq.s32.totalorder %s18, 1
    %p78 = por %p76, %p77
    %p79 = scmp.ne.s32.totalorder %s70, %s71
    %p80 = scmp.eq.s32.totalorder %s18, 0
    %p81 = por %p79, %p80
    %p82 = scmp.ne.s32.totalorder %s70, %s71
    %p83 = scmp.eq.s32.totalorder %s19, 1
    %p84 = por %p82, %p83
    %p86 = scmp.ne.s32.totalorder %s71, %s85
    %p87 = scmp.eq.s32.totalorder %s19, 0
    %p88 = por %p86, %p87
    %s90 = sadd.s32 %s89, 1
    %p93 = scmp.eq.s32.totalorder %s13, 1
    %p94 = scmp.ne.s32.totalorder %s89, %s91
    %p95 = scmp.eq.s32.totalorder %s13, 0
    %p96 = por %p94, %p95
    %p97 = scmp.ne.s32.totalorder %s89, %s91
    %p98 = scmp.eq.s32.totalorder %s18, 1
    %p99 = por %p97, %p98
    %p100 = scmp.ne.s32.totalorder %s91, %s92
    %p101 = scmp.eq.s32.totalorder %s18, 0
    %p102 = por %p100, %p101
    %p103 = scmp.ne.s32.totalorder %s91, %s92
    %p104 = scmp.eq.s32.totalorder %s19, 1
    %p105 = por %p103, %p104
    %p107 = scmp.ne.s32.totalorder %s92, %s106
    %p108 = scmp.eq.s32.totalorder %s19, 0
    %p109 = por %p107, %p108
    %s111 = sadd.s32 %s110, 1
    %p114 = scmp.eq.s32.totalorder %s13, 1
    %p115 = scmp.ne.s32.totalorder %s110, %s112
    %p116 = scmp.eq.s32.totalorder %s13, 0
    %p117 = por %p115, %p116
    %p118 = scmp.ne.s32.totalorder %s110, %s112
    %p119 = scmp.eq.s32.totalorder %s18, 1
    %p120 = por %p118, %p119
    %p121 = scmp.ne.s32.totalorder %s112, %s113
    %p122 = scmp.eq.s32.totalorder %s18, 0
    %p123 = por %p121, %p122
    %p124 = scmp.ne.s32.totalorder %s112, %s113
    %p125 = scmp.eq.s32.totalorder %s19, 1
    %p126 = por %p124, %p125
    %p128 = scmp.ne.s32.totalorder %s113, %s127
    %p129 = scmp.eq.s32.totalorder %s19, 0
    %p130 = por %p128, %p129
    %s132 = sadd.s32 %s131, 1
    %p135 = scmp.eq.s32.totalorder %s13, 1
    %p136 = scmp.ne.s32.totalorder %s131, %s133
    %p137 = scmp.eq.s32.totalorder %s13, 0
    %p138 = por %p136, %p137
    %p139 = scmp.ne.s32.totalorder %s131, %s133
    %p140 = scmp.eq.s32.totalorder %s18, 1
    %p141 = por %p139, %p140
    %p142 = scmp.ne.s32.totalorder %s133, %s134
    %p143 = scmp.eq.s32.totalorder %s18, 0
    %p144 = por %p142, %p143
    %p145 = scmp.ne.s32.totalorder %s133, %s134
    %p146 = scmp.eq.s32.totalorder %s19, 1
    %p147 = por %p145, %p146
    %p149 = scmp.ne.s32.totalorder %s134, %s148
    %p150 = scmp.eq.s32.totalorder %s19, 0
    %p151 = por %p149, %p150
    %s153 = sadd.s32 %s152, 1
    %p156 = scmp.eq.s32.totalorder %s13, 1
    %p157 = scmp.ne.s32.totalorder %s152, %s154
    %p158 = scmp.eq.s32.totalorder %s13, 0
    %p159 = por %p157, %p158
    %p160 = scmp.ne.s32.totalorder %s152, %s154
    %p161 = scmp.eq.s32.totalorder %s18, 1
    %p162 = por %p160, %p161
    %p163 = scmp.ne.s32.totalorder %s154, %s155
    %p164 = scmp.eq.s32.totalorder %s18, 0
    %p165 = por %p163, %p164
    %p166 = scmp.ne.s32.totalorder %s154, %s155
    %p167 = scmp.eq.s32.totalorder %s19, 1
    %p168 = por %p166, %p167
    %p170 = scmp.ne.s32.totalorder %s155, %s169
    %p171 = scmp.eq.s32.totalorder %s19, 0
    %p172 = por %p170, %p171
    %s173 = ssub.s32 %s13, %s20
    %p174 = scmp.eq.s32.totalorder %s173, 0
    %s176 = sadd.s32 %s175, 1
    %s177 = scalar_select %p174, %s175, %s176
    %p180 = pneg %p174
    %p181 = scmp.eq.s32.totalorder %s13, 1
    %p182 = por %p180, %p181
    %p183 = scmp.ne.s32.totalorder %s175, %s178
    %p184 = scmp.eq.s32.totalorder %s13, 0
    %p185 = por %p183, %p184
    %p186 = scmp.ne.s32.totalorder %s175, %s178
    %p187 = scmp.eq.s32.totalorder %s18, 1
    %p188 = por %p186, %p187
    %p189 = scmp.ne.s32.totalorder %s178, %s179
    %p190 = scmp.eq.s32.totalorder %s18, 0
    %p191 = por %p189, %p190
    %p192 = scmp.ne.s32.totalorder %s178, %s179
    %p193 = scmp.eq.s32.totalorder %s19, 1
    %p194 = por %p192, %p193
    %p196 = scmp.ne.s32.totalorder %s179, %s195
    %p197 = scmp.eq.s32.totalorder %s19, 0
    %p198 = por %p196, %p197
    %p199 = scmp.le.s32.totalorder 1, %s13
    %p200 = scmp.lt.s32.totalorder %s13, 3
    %p201 = pnand %p199, %p200
    %p202 = pneg %p201
    // Predicated region
    $region9: #{_lambda_.12} parent=5 // pred_check
      _
    $region10: #{_lambda_.12} parent=5 // pred_check_branch
      %204 = sbr.rel (%p201) target = $region12
    $region11: #{_lambda_.12} parent=5 // pred_region
      %s205 = ssub.s32 %s13, 1
      // Predicated region
      $region13: #{_lambda_.12} parent=11 // pred_check
        %p206 = pneg %p60
      $region14: #{_lambda_.12} parent=11 // pred_check_branch
        %208 = sbr.rel (%p206) target = $region16
      $region15: #{_lambda_.12} parent=11 // pred_region
        _
      $region16: #{_lambda_.12} parent=11 // pred_fallthru
        _
      // Predicated region
      $region17: #{_lambda_.12} parent=11 // pred_check
        %p209 = pneg %p81
      $region18: #{_lambda_.12} parent=11 // pred_check_branch
        %211 = sbr.rel (%p209) target = $region20
      $region19: #{_lambda_.12} parent=11 // pred_region
        _
      $region20: #{_lambda_.12} parent=11 // pred_fallthru
        _
      // Predicated region
      $region21: #{_lambda_.12} parent=11 // pred_check
        %p212 = pneg %p102
      $region22: #{_lambda_.12} parent=11 // pred_check_branch
        %214 = sbr.rel (%p212) target = $region24
      $region23: #{_lambda_.12} parent=11 // pred_region
        _
      $region24: #{_lambda_.12} parent=11 // pred_fallthru
        _
      // Predicated region
      $region25: #{_lambda_.12} parent=11 // pred_check
        %p215 = pneg %p123
      $region26: #{_lambda_.12} parent=11 // pred_check_branch
        %217 = sbr.rel (%p215) target = $region28
      $region27: #{_lambda_.12} parent=11 // pred_region
        _
      $region28: #{_lambda_.12} parent=11 // pred_fallthru
        _
      // Predicated region
      $region29: #{_lambda_.12} parent=11 // pred_check
        %p218 = pneg %p144
      $region30: #{_lambda_.12} parent=11 // pred_check_branch
        %220 = sbr.rel (%p218) target = $region32
      $region31: #{_lambda_.12} parent=11 // pred_region
        _
      $region32: #{_lambda_.12} parent=11 // pred_fallthru
        _
      // Predicated region
      $region33: #{_lambda_.12} parent=11 // pred_check
        %p221 = pneg %p165
      $region34: #{_lambda_.12} parent=11 // pred_check_branch
        %223 = sbr.rel (%p221) target = $region36
      $region35: #{_lambda_.12} parent=11 // pred_region
        _
      $region36: #{_lambda_.12} parent=11 // pred_fallthru
        _
    $region12: #{_lambda_.12} parent=5 // pred_fallthru
      _
    %p224 = scmp.lt.s32.totalorder %s13, 2
    // Predicated region
    $region37: #{_lambda_.12} parent=5 // pred_check
      %p225 = pneg %p224
    $region38: #{_lambda_.12} parent=5 // pred_check_branch
      %227 = sbr.rel (%p225) target = $region40
    $region39: #{_lambda_.12} parent=5 // pred_region
      // Predicated region
      $region41: #{_lambda_.12} parent=39 // pred_check
        %p228 = pneg %p33
      $region42: #{_lambda_.12} parent=39 // pred_check_branch
        %230 = sbr.rel (%p228) target = $region44
      $region43: #{_lambda_.12} parent=39 // pred_region
        %p231 = scmp.lt.s32.totalorder %s13, 1
        %s232 = scalar_select %p231, %s13, 1
        %s233 = smul.addr %s232, 8
        %s234 = scalar_lea.vmem %s0, %s233
      $region44: #{_lambda_.12} parent=39 // pred_fallthru
        _
    $region40: #{_lambda_.12} parent=5 // pred_fallthru
      _
    %p235 = scmp.le.s32.totalorder 1, %s13
    %p236 = scmp.lt.s32.totalorder %s13, 3
    %p237 = pnand %p235, %p236
    %p238 = pneg %p237
    // Predicated region
    $region45: #{_lambda_.12} parent=5 // pred_check
      _
    $region46: #{_lambda_.12} parent=5 // pred_check_branch
      %240 = sbr.rel (%p237) target = $region48
    $region47: #{_lambda_.12} parent=5 // pred_region
      %s241 = ssub.s32 %s13, 1
      %p242 = scmp.lt.s32.totalorder %s18, 1
      %s243 = scalar_select %p242, %s18, 1
      %s244 = smul.addr %s243, 8
      %s245 = scalar_lea.vmem %s0, %s244
      %p246 = pneg %p39
      %p247 = pneg %p36
      %p248 = pneg %p60
      %p249 = pneg %p57
      %p250 = pneg %p81
      %p251 = pneg %p78
      %p252 = pneg %p102
      %p253 = pneg %p99
      %p254 = pneg %p123
      %p255 = pneg %p120
      %p256 = pneg %p144
      %p257 = pneg %p141
      %p258 = pneg %p165
      %p259 = pneg %p162
      %p260 = pneg %p191
      %p261 = pneg %p188
      %p262 = scmp.lt.s32.totalorder %s18, 1
      %s263 = scalar_select %p262, %s18, 1
      %s264 = smul.addr %s263, 8
      %s265 = scalar_lea.vmem %s7, %s264
      %p266 = scmp.lt.s32.totalorder %s18, 1
      %s267 = scalar_select %p266, %s18, 1
      %s268 = smul.addr %s267, 8
      %s269 = scalar_lea.vmem %s0, %s268
      %p270 = scmp.lt.s32.totalorder %s18, 1
      %s271 = scalar_select %p270, %s18, 1
      %s272 = smul.addr %s271, 8
      %s273 = scalar_lea.vmem %s7, %s272
      %v275 = vld [vmem:[%s269] sm:$0xff]
      %v276 = vpack.c.bf16 %v275, %v275
      %v277 = vld [vmem:[%s1] sm:$0xff]
      %v278 = vld [vmem:[%s1 + $0x8] sm:$0xff]
      %v279 = vld [vmem:[%s1 + $0x10] sm:$0xff]
      %v280 = vld [vmem:[%s1 + $0x18] sm:$0xff]
      %v281 = vld [vmem:[%s1 + $0x20] sm:$0xff]
      %v282 = vld [vmem:[%s1 + $0x28] sm:$0xff]
      %v283 = vld [vmem:[%s1 + $0x30] sm:$0xff]
      %v284 = vld [vmem:[%s1 + $0x38] sm:$0xff]
      %v285 = vld [vmem:[%s1 + $0x40] sm:$0xff]
      %v286 = vld [vmem:[%s1 + $0x48] sm:$0xff]
      %v287 = vld [vmem:[%s1 + $0x50] sm:$0xff]
      %v288 = vld [vmem:[%s1 + $0x58] sm:$0xff]
      %v289 = vld [vmem:[%s1 + $0x60] sm:$0xff]
      %v290 = vld [vmem:[%s1 + $0x68] sm:$0xff]
      %v291 = vld [vmem:[%s1 + $0x70] sm:$0xff]
      %v292 = vld [vmem:[%s1 + $0x78] sm:$0xff]
      %v293 = vld [vmem:[%s2] sm:$0x3]
      %v295 = vlaneseq
      %v296 = vshrl.u32 %v295, 7
      %v297 = vsub.s32 0, %v296
      %v298 = vrot.slane %v293, %v297
      %v299 = vlaneseq
      %v300 = vshrl.u32 %v299, 7
      %v301 = vsub.s32 1, %v300
      %v302 = vrot.slane %v293, %v301
      %v321 = vunpack.c.l.b16 %v277
      %v322 = vunpack.c.h.b16 %v277
      %v323 = vunpack.c.l.b16 %v278
      %v324 = vunpack.c.h.b16 %v278
      %v325 = vunpack.c.l.b16 %v279
      %v326 = vunpack.c.h.b16 %v279
      %v327 = vunpack.c.l.b16 %v280
      %v328 = vunpack.c.h.b16 %v280
      %v329 = vunpack.c.l.b16 %v281
      %v330 = vunpack.c.h.b16 %v281
      %v331 = vunpack.c.l.b16 %v282
      %v332 = vunpack.c.h.b16 %v282
      %v333 = vunpack.c.l.b16 %v283
      %v334 = vunpack.c.h.b16 %v283
      %v335 = vunpack.c.l.b16 %v284
      %v336 = vunpack.c.h.b16 %v284
      %v337 = vunpack.c.l.b16 %v285
      %v338 = vunpack.c.h.b16 %v285
      %v339 = vunpack.c.l.b16 %v286
      %v340 = vunpack.c.h.b16 %v286
      %v341 = vunpack.c.l.b16 %v287
      %v342 = vunpack.c.h.b16 %v287
      %v343 = vunpack.c.l.b16 %v288
      %v344 = vunpack.c.h.b16 %v288
      %v345 = vunpack.c.l.b16 %v289
      %v346 = vunpack.c.h.b16 %v289
      %v347 = vunpack.c.l.b16 %v290
      %v348 = vunpack.c.h.b16 %v290
      %v349 = vunpack.c.l.b16 %v291
      %v350 = vunpack.c.h.b16 %v291
      %v351 = vunpack.c.l.b16 %v292
      %v352 = vunpack.c.h.b16 %v292
      %v353 = vpack.c.b16 %v323, %v321
      %v354 = vpack.c.b16 %v324, %v322
      %v355 = vpack.c.b16 %v327, %v325
      %v356 = vpack.c.b16 %v328, %v326
      %v357 = vpack.c.b16 %v331, %v329
      %v358 = vpack.c.b16 %v332, %v330
      %v359 = vpack.c.b16 %v335, %v333
      %v360 = vpack.c.b16 %v336, %v334
      %v361 = vpack.c.b16 %v339, %v337
      %v362 = vpack.c.b16 %v340, %v338
      %v363 = vpack.c.b16 %v343, %v341
      %v364 = vpack.c.b16 %v344, %v342
      %v365 = vpack.c.b16 %v347, %v345
      %v366 = vpack.c.b16 %v348, %v346
      %v367 = vpack.c.b16 %v351, %v349
      %v368 = vpack.c.b16 %v352, %v350
      %385 = vmatprep.subr.bf16.mxu0 %v354
      %386 = vmatpush1.bf16.msra.mxu0 %v353
      %387 = vmatprep.subr.bf16.mxu0 %v356
      %388 = vmatpush1.bf16.msra.mxu0 %v355
      %389 = vmatprep.subr.bf16.mxu0 %v358
      %390 = vmatpush1.bf16.msra.mxu0 %v357
      %391 = vmatprep.subr.bf16.mxu0 %v360
      %392 = vmatpush1.bf16.msra.mxu0 %v359
      %393 = vmatprep.subr.bf16.mxu0 %v362
      %394 = vmatpush1.bf16.msra.mxu0 %v361
      %395 = vmatprep.subr.bf16.mxu0 %v364
      %396 = vmatpush1.bf16.msra.mxu0 %v363
      %397 = vmatprep.subr.bf16.mxu0 %v366
      %398 = vmatpush1.bf16.msra.mxu0 %v365
      %399 = vmatprep.subr.bf16.mxu0 %v368
      %400 = vmatpush1.bf16.msra.mxu0 %v367
      %401 = vmatprep.subr.bf16.mxu0 0
      %402 = vmatpush1.bf16.msra.mxu0 0
      %403 = vmatprep.subr.bf16.mxu0 0
      %404 = vmatpush1.bf16.msra.mxu0 0
      %405 = vmatprep.subr.bf16.mxu0 0
      %406 = vmatpush1.bf16.msra.mxu0 0
      %407 = vmatprep.subr.bf16.mxu0 0
      %408 = vmatpush1.bf16.msra.mxu0 0
      %409 = vmatprep.subr.bf16.mxu0 0
      %410 = vmatpush1.bf16.msra.mxu0 0
      %411 = vmatprep.subr.bf16.mxu0 0
      %412 = vmatpush1.bf16.msra.mxu0 0
      %413 = vmatprep.subr.bf16.mxu0 0
      %414 = vmatpush1.bf16.msra.mxu0 0
      %415 = vmatprep.subr.bf16.mxu0 0
      %416 = vmatpush1.bf16.msra.mxu0 0
      %417 = vmatprep.mubr.bf16.mxu0 0
      %418 = vmatmul.mubr.bf16.gmra.mrb[0].mxu0 %v276
      %v419 = vpop.f32.mrb[0].mxu0
      %v420 = vadd.f32 %v298, %v419
      %v421 = vpop.f32.mrb[0].mxu0
      %v422 = vadd.f32 %v302, %v421
      %v423 = vpop.f32.mrb[0].mxu0
      %v424 = vpop.f32.mrb[0].mxu0
      %425 = vdwg.mxu0
      %v426 = vmax.f32 %v420, 0.0
      %v427 = vmax.f32 %v422, 0.0
      %v428 = vpack.c.bf16 %v426, %v426
      %v429 = vpack.c.bf16 %v427, %v427
      %v430 = vld [vmem:[%s3] sm:$0xf]
      %v431 = vld [vmem:[%s3 + $0x4] sm:$0xf]
      %v432 = vld [vmem:[%s3 + $0x8] sm:$0xf]
      %v433 = vld [vmem:[%s3 + $0xc] sm:$0xf]
      %v434 = vld [vmem:[%s3 + $0x10] sm:$0xf]
      %v435 = vld [vmem:[%s3 + $0x14] sm:$0xf]
      %v436 = vld [vmem:[%s3 + $0x18] sm:$0xf]
      %v437 = vld [vmem:[%s3 + $0x1c] sm:$0xf]
      %v438 = vld [vmem:[%s3 + $0x20] sm:$0xf]
      %v439 = vld [vmem:[%s3 + $0x24] sm:$0xf]
      %v440 = vld [vmem:[%s3 + $0x28] sm:$0xf]
      %v441 = vld [vmem:[%s3 + $0x2c] sm:$0xf]
      %v442 = vld [vmem:[%s3 + $0x30] sm:$0xf]
      %v443 = vld [vmem:[%s3 + $0x34] sm:$0xf]
      %v444 = vld [vmem:[%s3 + $0x38] sm:$0xf]
      %v445 = vld [vmem:[%s3 + $0x3c] sm:$0xf]
      %v446 = vld [vmem:[%s3 + $0x40] sm:$0xf]
      %v447 = vld [vmem:[%s3 + $0x44] sm:$0xf]
      %v448 = vld [vmem:[%s3 + $0x48] sm:$0xf]
      %v449 = vld [vmem:[%s3 + $0x4c] sm:$0xf]
      %v450 = vld [vmem:[%s3 + $0x50] sm:$0xf]
      %v451 = vld [vmem:[%s3 + $0x54] sm:$0xf]
      %v452 = vld [vmem:[%s3 + $0x58] sm:$0xf]
      %v453 = vld [vmem:[%s3 + $0x5c] sm:$0xf]
      %v454 = vld [vmem:[%s3 + $0x60] sm:$0xf]
      %v455 = vld [vmem:[%s3 + $0x64] sm:$0xf]
      %v456 = vld [vmem:[%s3 + $0x68] sm:$0xf]
      %v457 = vld [vmem:[%s3 + $0x6c] sm:$0xf]
      %v458 = vld [vmem:[%s3 + $0x70] sm:$0xf]
      %v459 = vld [vmem:[%s3 + $0x74] sm:$0xf]
      %v460 = vld [vmem:[%s3 + $0x78] sm:$0xf]
      %v461 = vld [vmem:[%s3 + $0x7c] sm:$0xf]
      %v462 = vld [vmem:[%s4] sm:$0x1]
      %v464 = vlaneseq
      %v465 = vshrl.u32 %v464, 7
      %v466 = vsub.s32 0, %v465
      %v467 = vrot.slane %v462, %v466
      %v501 = vunpack.c.l.b16 %v430
      %v502 = vunpack.c.l.b16 %v431
      %v503 = vunpack.c.l.b16 %v432
      %v504 = vunpack.c.l.b16 %v433
      %v505 = vunpack.c.l.b16 %v434
      %v506 = vunpack.c.l.b16 %v435
      %v507 = vunpack.c.l.b16 %v436
      %v508 = vunpack.c.l.b16 %v437
      %v509 = vunpack.c.l.b16 %v438
      %v510 = vunpack.c.l.b16 %v439
      %v511 = vunpack.c.l.b16 %v440
      %v512 = vunpack.c.l.b16 %v441
      %v513 = vunpack.c.l.b16 %v442
      %v514 = vunpack.c.l.b16 %v443
      %v515 = vunpack.c.l.b16 %v444
      %v516 = vunpack.c.l.b16 %v445
      %v517 = vunpack.c.l.b16 %v446
      %v518 = vunpack.c.l.b16 %v447
      %v519 = vunpack.c.l.b16 %v448
      %v520 = vunpack.c.l.b16 %v449
      %v521 = vunpack.c.l.b16 %v450
      %v522 = vunpack.c.l.b16 %v451
      %v523 = vunpack.c.l.b16 %v452
      %v524 = vunpack.c.l.b16 %v453
      %v525 = vunpack.c.l.b16 %v454
      %v526 = vunpack.c.l.b16 %v455
      %v527 = vunpack.c.l.b16 %v456
      %v528 = vunpack.c.l.b16 %v457
      %v529 = vunpack.c.l.b16 %v458
      %v530 = vunpack.c.l.b16 %v459
      %v531 = vunpack.c.l.b16 %v460
      %v532 = vunpack.c.l.b16 %v461
      %v533 = vpack.c.b16 %v502, %v501
      %v534 = vpack.c.b16 %v504, %v503
      %v535 = vpack.c.b16 %v506, %v505
      %v536 = vpack.c.b16 %v508, %v507
      %v537 = vpack.c.b16 %v510, %v509
      %v538 = vpack.c.b16 %v512, %v511
      %v539 = vpack.c.b16 %v514, %v513
      %v540 = vpack.c.b16 %v516, %v515
      %v541 = vpack.c.b16 %v518, %v517
      %v542 = vpack.c.b16 %v520, %v519
      %v543 = vpack.c.b16 %v522, %v521
      %v544 = vpack.c.b16 %v524, %v523
      %v545 = vpack.c.b16 %v526, %v525
      %v546 = vpack.c.b16 %v528, %v527
      %v547 = vpack.c.b16 %v530, %v529
      %v548 = vpack.c.b16 %v532, %v531
      %565 = vmatprep.subr.bf16.mxu0 0
      %566 = vmatpush1.bf16.msra.mxu0 %v533
      %567 = vmatprep.subr.bf16.mxu0 0
      %568 = vmatpush1.bf16.msra.mxu0 %v534
      %569 = vmatprep.subr.bf16.mxu0 0
      %570 = vmatpush1.bf16.msra.mxu0 %v535
      %571 = vmatprep.subr.bf16.mxu0 0
      %572 = vmatpush1.bf16.msra.mxu0 %v536
      %573 = vmatprep.subr.bf16.mxu0 0
      %574 = vmatpush1.bf16.msra.mxu0 %v537
      %575 = vmatprep.subr.bf16.mxu0 0
      %576 = vmatpush1.bf16.msra.mxu0 %v538
      %577 = vmatprep.subr.bf16.mxu0 0
      %578 = vmatpush1.bf16.msra.mxu0 %v539
      %579 = vmatprep.subr.bf16.mxu0 0
      %580 = vmatpush1.bf16.msra.mxu0 %v540
      %581 = vmatprep.subr.bf16.mxu0 0
      %582 = vmatpush1.bf16.msra.mxu0 %v541
      %583 = vmatprep.subr.bf16.mxu0 0
      %584 = vmatpush1.bf16.msra.mxu0 %v542
      %585 = vmatprep.subr.bf16.mxu0 0
      %586 = vmatpush1.bf16.msra.mxu0 %v543
      %587 = vmatprep.subr.bf16.mxu0 0
      %588 = vmatpush1.bf16.msra.mxu0 %v544
      %589 = vmatprep.subr.bf16.mxu0 0
      %590 = vmatpush1.bf16.msra.mxu0 %v545
      %591 = vmatprep.subr.bf16.mxu0 0
      %592 = vmatpush1.bf16.msra.mxu0 %v546
      %593 = vmatprep.subr.bf16.mxu0 0
      %594 = vmatpush1.bf16.msra.mxu0 %v547
      %595 = vmatprep.subr.bf16.mxu0 0
      %596 = vmatpush1.bf16.msra.mxu0 %v548
      %597 = vmatprep.mubr.bf16.mxu0 %v429
      %598 = vmatmul.mubr.bf16.gmra.mrb[0].mxu0 %v428
      %v599 = vpop.f32.mrb[0].mxu0
      %v600 = vadd.f32 %v467, %v599
      %v601 = vpop.f32.mrb[0].mxu0
      %v602 = vpop.f32.mrb[0].mxu0
      %v603 = vpop.f32.mrb[0].mxu0
      %604 = vdwg.mxu0
      %v605 = vadd.f32 %v600, %v275
      %606 = vadd.xlane.f32.xlu0 %v605
      %v607 = vpop.xlane.xlu0 %606
      %v608 = vrcp.pop 128.0
      %v609 = vmul.f32 %v607, %v608
      %v610 = vsub.f32 %v605, %v609
      %v611 = vmul.f32 %v610, %v610
      %612 = vadd.xlane.f32.xlu0 %v611
      %v613 = vpop.xlane.xlu0 %612
      %v614 = vmul.f32 %v613, %v608
      %v615 = vadd.f32 %v614, 1e-12
      %v616 = vrsqrt.pop %v615
      %v617 = vmul.f32 %v610, %v616
      %v618 = vld [vmem:[%s5] sm:$0x1]
      %v620 = vlaneseq
      %v621 = vshrl.u32 %v620, 7
      %v622 = vsub.s32 0, %v621
      %v623 = vrot.slane %v618, %v622
      %v625 = vmul.f32 %v617, %v623
      %v626 = vld [vmem:[%s6] sm:$0x1]
      %v628 = vlaneseq
      %v629 = vshrl.u32 %v628, 7
      %v630 = vsub.s32 0, %v629
      %v631 = vrot.slane %v626, %v630
      %v633 = vadd.f32 %v625, %v631
      %634 = vst [vmem:[%s273] sm:$0xff] %v633
      %p635 = scmp.lt.s32.totalorder %s18, 1
      %s636 = scalar_select %p635, %s18, 1
      %s637 = smul.addr %s636, 8
      %s638 = scalar_lea.vmem %s7, %s637
      // Predicated region
      $region49: #{_lambda_.12} parent=47 // pred_check
        %p639 = pneg %p188
      $region50: #{_lambda_.12} parent=47 // pred_check_branch
        %641 = sbr.rel (%p639) target = $region52
      $region51: #{_lambda_.12} parent=47 // pred_region
        _
      $region52: #{_lambda_.12} parent=47 // pred_fallthru
        _
    $region48: #{_lambda_.12} parent=5 // pred_fallthru
      _
    %p642 = scmp.le.s32.totalorder 2, %s13
    // Predicated region
    $region53: #{_lambda_.12} parent=5 // pred_check
      %p643 = pneg %p642
    $region54: #{_lambda_.12} parent=5 // pred_check_branch
      %645 = sbr.rel (%p643) target = $region56
    $region55: #{_lambda_.12} parent=5 // pred_region
      %s646 = ssub.s32 %s13, 2
      // Predicated region
      $region57: #{_lambda_.12} parent=55 // pred_check
        %p647 = pneg %p194
      $region58: #{_lambda_.12} parent=55 // pred_check_branch
        %649 = sbr.rel (%p647) target = $region60
      $region59: #{_lambda_.12} parent=55 // pred_region
        %p650 = scmp.lt.s32.totalorder %s19, 1
        %s651 = scalar_select %p650, %s19, 1
        %s652 = smul.addr %s651, 8
        %s653 = scalar_lea.vmem %s7, %s652
      $region60: #{_lambda_.12} parent=55 // pred_fallthru
        _
    $region56: #{_lambda_.12} parent=5 // pred_fallthru
      _
  $region6: #{_lambda_.12} parent=0 // loop_footer
    %s17 = sadd.s32 1, %s13
  $region7: #{_lambda_.12} parent=0 // loop_footer_branch
    %12 = sbr.rel target = $region3
  $region8: #{_lambda_.12} parent=0 // loop_exit
    _

// kernel: _lambda_.21
$region0: #{_lambda_.21}
  #allocation0 [shape = 'u32[]', space=smem, size = 0x4, offset = 0x4, fixed_abs, tag = 'smem constant byte address 0x4 - core index']
  #allocation1 [shape = 'u32[144,128]{1,0:T(1,128)}', space=vmem, size = 0x12000, scoped, tag = 'internal scratch']
  #allocation2 [shape = 'f32[16,128]{1,0:T(8,128)}', space=vmem, size = 0x2000, scoped, tag = 'scratch operand']
  %s0 = inlined_call_operand.vmem [shape: f32[16,128], index: 0, kind: input, shape index: {}]
  %s1 = inlined_call_operand.vmem [shape: bf16[128,128], index: 1, kind: input, shape index: {}]
  %s2 = inlined_call_operand.vmem [shape: f32[1,128], index: 2, kind: input, shape index: {}]
  %s3 = inlined_call_operand.hbm [shape: f32[16,128], index: 3, kind: output, shape index: {}]
  %s4 = sld [smem:[#allocation0]]
  $region30: #{_lambda_.21} parent=0
    _
  %s6 = ssub.s32 1, %s4
  %s7 = scalar_select 0, %s6, %s4
  $region1: #{_lambda_.21} parent=0
    #allocation3 [shape = 'u8[8192]{0}', space=vmem, size = 0x2000, scoped, tag = 'output window, operand 0, single buffered']
    #allocation4 [shape = 's32[1]{0}', space=sflag, size = 0x4, scoped, tag = 'scoped memory for _lambda_.21']
    %8 = vsyncpa [#allocation4], 0
    // Predicated region
    $region2: #{_lambda_.21} parent=1 // pred_check
      _
    $region3: #{_lambda_.21} parent=1 // pred_check_branch
      %10 = sbr.rel (0) target = $region5
    $region4: #{_lambda_.21} parent=1 // pred_region
      _
    $region5: #{_lambda_.21} parent=1 // pred_fallthru
      _
    // Predicated region
    $region6: #{_lambda_.21} parent=1 // pred_check
      _
    $region7: #{_lambda_.21} parent=1 // pred_check_branch
      %12 = sbr.rel (0) target = $region9
    $region8: #{_lambda_.21} parent=1 // pred_region
      _
    $region9: #{_lambda_.21} parent=1 // pred_fallthru
      _
    // Predicated region
    $region10: #{_lambda_.21} parent=1 // pred_check
      _
    $region11: #{_lambda_.21} parent=1 // pred_check_branch
      %14 = sbr.rel (0) target = $region13
    $region12: #{_lambda_.21} parent=1 // pred_region
      _
    $region13: #{_lambda_.21} parent=1 // pred_fallthru
      _
    %p16 = scmp.eq.s32.totalorder 0, 0
    // Predicated region
    $region14: #{_lambda_.21} parent=1 // pred_check
      %p17 = pneg %p16
    $region15: #{_lambda_.21} parent=1 // pred_check_branch
      %19 = sbr.rel (%p17) target = $region17
    $region16: #{_lambda_.21} parent=1 // pred_region
      %20 = vst [vmem:[#allocation2] sm:$0xff] 0.0
      %21 = vst [vmem:[#allocation2 + $0x8] sm:$0xff] 0.0
    $region17: #{_lambda_.21} parent=1 // pred_fallthru
      _
    %v22 = vld [vmem:[#allocation2] sm:$0xff]
    %v23 = vld [vmem:[#allocation2 + $0x8] sm:$0xff]
    %v24 = vld [vmem:[%s0] sm:$0xff]
    %v25 = vld [vmem:[%s0 + $0x8] sm:$0xff]
    %v26 = vpack.c.bf16 %v25, %v24
    %v27 = vld [vmem:[%s1] sm:$0xf]
    %v28 = vld [vmem:[%s1 + $0x4] sm:$0xf]
    %v29 = vld [vmem:[%s1 + $0x8] sm:$0xf]
    %v30 = vld [vmem:[%s1 + $0xc] sm:$0xf]
    %v31 = vld [vmem:[%s1 + $0x10] sm:$0xf]
    %v32 = vld [vmem:[%s1 + $0x14] sm:$0xf]
    %v33 = vld [vmem:[%s1 + $0x18] sm:$0xf]
    %v34 = vld [vmem:[%s1 + $0x1c] sm:$0xf]
    %v35 = vld [vmem:[%s1 + $0x20] sm:$0xf]
    %v36 = vld [vmem:[%s1 + $0x24] sm:$0xf]
    %v37 = vld [vmem:[%s1 + $0x28] sm:$0xf]
    %v38 = vld [vmem:[%s1 + $0x2c] sm:$0xf]
    %v39 = vld [vmem:[%s1 + $0x30] sm:$0xf]
    %v40 = vld [vmem:[%s1 + $0x34] sm:$0xf]
    %v41 = vld [vmem:[%s1 + $0x38] sm:$0xf]
    %v42 = vld [vmem:[%s1 + $0x3c] sm:$0xf]
    %v59 = vunpack.c.l.b16 %v27
    %v60 = vunpack.c.l.b16 %v28
    %v61 = vunpack.c.l.b16 %v29
    %v62 = vunpack.c.l.b16 %v30
    %v63 = vunpack.c.l.b16 %v31
    %v64 = vunpack.c.l.b16 %v32
    %v65 = vunpack.c.l.b16 %v33
    %v66 = vunpack.c.l.b16 %v34
    %v67 = vunpack.c.l.b16 %v35
    %v68 = vunpack.c.l.b16 %v36
    %v69 = vunpack.c.l.b16 %v37
    %v70 = vunpack.c.l.b16 %v38
    %v71 = vunpack.c.l.b16 %v39
    %v72 = vunpack.c.l.b16 %v40
    %v73 = vunpack.c.l.b16 %v41
    %v74 = vunpack.c.l.b16 %v42
    %v75 = vpack.c.b16 %v60, %v59
    %v76 = vpack.c.b16 %v62, %v61
    %v77 = vpack.c.b16 %v64, %v63
    %v78 = vpack.c.b16 %v66, %v65
    %v79 = vpack.c.b16 %v68, %v67
    %v80 = vpack.c.b16 %v70, %v69
    %v81 = vpack.c.b16 %v72, %v71
    %v82 = vpack.c.b16 %v74, %v73
    %91 = vmatprep.subr.bf16.mxu0 0
    %92 = vmatpush1.bf16.msra.mxu0 %v75
    %93 = vmatprep.subr.bf16.mxu0 0
    %94 = vmatpush1.bf16.msra.mxu0 %v76
    %95 = vmatprep.subr.bf16.mxu0 0
    %96 = vmatpush1.bf16.msra.mxu0 %v77
    %97 = vmatprep.subr.bf16.mxu0 0
    %98 = vmatpush1.bf16.msra.mxu0 %v78
    %99 = vmatprep.subr.bf16.mxu0 0
    %100 = vmatpush1.bf16.msra.mxu0 %v79
    %101 = vmatprep.subr.bf16.mxu0 0
    %102 = vmatpush1.bf16.msra.mxu0 %v80
    %103 = vmatprep.subr.bf16.mxu0 0
    %104 = vmatpush1.bf16.msra.mxu0 %v81
    %105 = vmatprep.subr.bf16.mxu0 0
    %106 = vmatpush1.bf16.msra.mxu0 %v82
    %107 = vmatprep.subr.bf16.mxu0 0
    %108 = vmatpush1.bf16.msra.mxu0 0
    %109 = vmatprep.subr.bf16.mxu0 0
    %110 = vmatpush1.bf16.msra.mxu0 0
    %111 = vmatprep.subr.bf16.mxu0 0
    %112 = vmatpush1.bf16.msra.mxu0 0
    %113 = vmatprep.subr.bf16.mxu0 0
    %114 = vmatpush1.bf16.msra.mxu0 0
    %115 = vmatprep.subr.bf16.mxu0 0
    %116 = vmatpush1.bf16.msra.mxu0 0
    %117 = vmatprep.subr.bf16.mxu0 0
    %118 = vmatpush1.bf16.msra.mxu0 0
    %119 = vmatprep.subr.bf16.mxu0 0
    %120 = vmatpush1.bf16.msra.mxu0 0
    %121 = vmatprep.subr.bf16.mxu0 0
    %122 = vmatpush1.bf16.msra.mxu0 0
    %123 = vmatprep.mubr.bf16.mxu0 0
    %124 = vmatmul.mubr.bf16.gmra.mrb[0].mxu0 %v26
    %v125 = vpop.f32.mrb[0].mxu0
    %v126 = vadd.f32 0.0, %v125
    %v127 = vpop.f32.mrb[0].mxu0
    %v128 = vpop.f32.mrb[0].mxu0
    %v129 = vadd.f32 0.0, %v128
    %v130 = vpop.f32.mrb[0].mxu0
    %131 = vdwg.mxu0
    %v132 = vadd.f32 %v22, %v126
    %v133 = vadd.f32 %v23, %v129
    %134 = vst [vmem:[#allocation2] sm:$0xff] %v132
    %135 = vst [vmem:[#allocation2 + $0x8] sm:$0xff] %v133
    // Predicated region
    $region18: #{_lambda_.21} parent=1 // pred_check
      %p136 = pneg %p16
    $region19: #{_lambda_.21} parent=1 // pred_check_branch
      %138 = sbr.rel (%p136) target = $region21
    $region20: #{_lambda_.21} parent=1 // pred_region
      %v139 = vld [vmem:[#allocation2] sm:$0xff]
      %v140 = vld [vmem:[#allocation2 + $0x8] sm:$0xff]
      %v141 = vld [vmem:[%s2] sm:$0x1]
      %v143 = vlaneseq
      %v144 = vshrl.u32 %v143, 7
      %v145 = vsub.s32 0, %v144
      %v146 = vrot.slane %v141, %v145
      %v148 = vadd.f32 %v139, %v146
      %v149 = vadd.f32 %v140, %v146
      %150 = vst [vmem:[#allocation3] sm:$0xff] %v148
      %151 = vst [vmem:[#allocation3 + $0x8] sm:$0xff] %v149
    $region21: #{_lambda_.21} parent=1 // pred_fallthru
      _
    // Predicated region
    $region22: #{_lambda_.21} parent=1 // pred_check
      _
    $region23: #{_lambda_.21} parent=1 // pred_check_branch
      %153 = sbr.rel (0) target = $region25
    $region24: #{_lambda_.21} parent=1 // pred_region
      %s155 = ssub.s32 256, 256
      %156 = vsyncadd [#allocation4], %s155
      %s157 = sshll.u32 [#allocation3], 4
      %s158 = int_to_ptr.vmem [resolvable:$true] %s157
      %163 = dma.vmem_to_hbm [thread:$0]  %s158, 256, %s3, [#allocation4], 128, 128, 8
    $region25: #{_lambda_.21} parent=1 // pred_fallthru
      _
    // Predicated region
    $region26: #{_lambda_.21} parent=1 // pred_check
      _
    $region27: #{_lambda_.21} parent=1 // pred_check_branch
      %165 = sbr.rel (0) target = $region29
    $region28: #{_lambda_.21} parent=1 // pred_region
      %166 = dma.done [#allocation4], 256
    $region29: #{_lambda_.21} parent=1 // pred_fallthru
      _
    %167 = vsyncpa [#allocation4], 1

// kernel: _lambda_.15
$region0: #{_lambda_.15}
  #allocation0 [shape = 'u32[]', space=smem, size = 0x4, offset = 0x4, fixed_abs, tag = 'smem constant byte address 0x4 - core index']
  #allocation1 [shape = 'u32[144,128]{1,0:T(1,128)}', space=vmem, size = 0x12000, scoped, tag = 'internal scratch']
  %s0 = inlined_call_operand.vmem [shape: f32[2,8,128], index: 0, kind: input, shape index: {}, may-alias: {0,1}]
  %s1 = inlined_call_operand.vmem [shape: f32[2,8,128], index: 1, kind: input, shape index: {}, may-alias: {0,1}]
  %s2 = inlined_call_operand.vmem [shape: s32[2,8,8], index: 2, kind: input, shape index: {}]
  %s3 = inlined_call_operand.vmem [shape: bf16[128,128], index: 3, kind: input, shape index: {}]
  %s4 = inlined_call_operand.vmem [shape: f32[1,128], index: 4, kind: input, shape index: {}]
  %s5 = inlined_call_operand.vmem [shape: bf16[128,256], index: 5, kind: input, shape index: {}]
  %s6 = inlined_call_operand.vmem [shape: f32[1,256], index: 6, kind: input, shape index: {}]
  %s7 = inlined_call_operand.vmem [shape: bf16[128,128], index: 7, kind: input, shape index: {}]
  %s8 = inlined_call_operand.vmem [shape: f32[1,128], index: 8, kind: input, shape index: {}]
  %s9 = inlined_call_operand.vmem [shape: f32[1,128], index: 9, kind: input, shape index: {}]
  %s10 = inlined_call_operand.vmem [shape: f32[1,128], index: 10, kind: input, shape index: {}]
  %s11 = inlined_call_operand.vmem [shape: f32[2,8,128], index: 11, kind: output, shape index: {}]
  %s12 = sld [smem:[#allocation0]]
  $region77: #{_lambda_.15} parent=0
    _
  %s14 = ssub.s32 1, %s12
  %s15 = scalar_select 0, %s14, %s12
  loop: start=0, step=1, limit=4
  $region2: #{_lambda_.15} parent=0 // loop_pre_header
    _
  $region3: #{_lambda_.15} parent=0 // loop_header
    %s17 = sphi 0, %s21
    %p18 = scmp.ge.s32.totalorder %s17, 4
    %s27 = sphi 0, %s29
    %s30 = sphi 0, %s27
    %s31 = sphi 0, %s30
    %s47 = sphi 0, %s31
    %s53 = sphi 0, %s55
    %s56 = sphi 0, %s53
    %s57 = sphi 0, %s56
    %s73 = sphi 0, %s57
    %s79 = sphi 0, %s81
    %s82 = sphi 0, %s79
    %s83 = sphi 0, %s82
    %s99 = sphi 0, %s83
    %s103 = sphi 0, %s103
    %s105 = sphi 0, %s103
    %s106 = sphi 0, %s105
    %s120 = sphi 0, %s106
    %s124 = sphi 0, %s124
    %s126 = sphi 0, %s124
    %s127 = sphi 0, %s126
    %s141 = sphi 0, %s127
    %s145 = sphi 0, %s145
    %s147 = sphi 0, %s145
    %s148 = sphi 0, %s147
    %s162 = sphi 0, %s148
    %s166 = sphi 0, %s166
    %s168 = sphi 0, %s166
    %s169 = sphi 0, %s168
    %s183 = sphi 0, %s169
    %s187 = sphi 0, %s187
    %s189 = sphi 0, %s187
    %s190 = sphi 0, %s189
    %s204 = sphi 0, %s190
    %s208 = sphi 0, %s208
    %s210 = sphi 0, %s208
    %s211 = sphi 0, %s210
    %s225 = sphi 0, %s211
    %s229 = sphi 0, %s229
    %s231 = sphi 0, %s229
    %s232 = sphi 0, %s231
    %s246 = sphi 0, %s232
    %s250 = sphi 0, %s250
    %s252 = sphi 0, %s250
    %s253 = sphi 0, %s252
    %s267 = sphi 0, %s253
    %s273 = sphi 0, %s275
    %s276 = sphi 0, %s273
    %s277 = sphi 0, %s276
    %s293 = sphi 0, %s277
  $region4: #{_lambda_.15} parent=0 // loop_header_branch
    %20 = sbr.rel (%p18) target = $region8
  $region5: #{_lambda_.15} parent=0 // loop_body
    %s22 = ssub.s32 %s17, 1
    %s23 = ssub.s32 %s17, 2
    %s24 = sadd.s32 %s17, 1
    %s25 = ssub.s32 %s17, %s24
    %p26 = scmp.eq.s32.totalorder %s25, 0
    %s28 = sadd.s32 %s27, 1
    %s29 = scalar_select %p26, %s27, %s28
    %p32 = pneg %p26
    %p33 = scmp.eq.s32.totalorder %s17, 1
    %p34 = por %p32, %p33
    %p35 = scmp.ne.s32.totalorder %s27, %s30
    %p36 = scmp.eq.s32.totalorder %s17, 0
    %p37 = por %p35, %p36
    %p38 = scmp.ne.s32.totalorder %s27, %s30
    %p39 = scmp.eq.s32.totalorder %s22, 1
    %p40 = por %p38, %p39
    %p41 = scmp.ne.s32.totalorder %s30, %s31
    %p42 = scmp.eq.s32.totalorder %s22, 0
    %p43 = por %p41, %p42
    %p44 = scmp.ne.s32.totalorder %s30, %s31
    %p45 = scmp.eq.s32.totalorder %s23, 1
    %p46 = por %p44, %p45
    %p48 = scmp.ne.s32.totalorder %s31, %s47
    %p49 = scmp.eq.s32.totalorder %s23, 0
    %p50 = por %p48, %p49
    %s51 = ssub.s32 %s17, %s24
    %p52 = scmp.eq.s32.totalorder %s51, 0
    %s54 = sadd.s32 %s53, 1
    %s55 = scalar_select %p52, %s53, %s54
    %p58 = pneg %p52
    %p59 = scmp.eq.s32.totalorder %s17, 1
    %p60 = por %p58, %p59
    %p61 = scmp.ne.s32.totalorder %s53, %s56
    %p62 = scmp.eq.s32.totalorder %s17, 0
    %p63 = por %p61, %p62
    %p64 = scmp.ne.s32.totalorder %s53, %s56
    %p65 = scmp.eq.s32.totalorder %s22, 1
    %p66 = por %p64, %p65
    %p67 = scmp.ne.s32.totalorder %s56, %s57
    %p68 = scmp.eq.s32.totalorder %s22, 0
    %p69 = por %p67, %p68
    %p70 = scmp.ne.s32.totalorder %s56, %s57
    %p71 = scmp.eq.s32.totalorder %s23, 1
    %p72 = por %p70, %p71
    %p74 = scmp.ne.s32.totalorder %s57, %s73
    %p75 = scmp.eq.s32.totalorder %s23, 0
    %p76 = por %p74, %p75
    %s77 = ssub.s32 %s17, %s24
    %p78 = scmp.eq.s32.totalorder %s77, 0
    %s80 = sadd.s32 %s79, 1
    %s81 = scalar_select %p78, %s79, %s80
    %p84 = pneg %p78
    %p85 = scmp.eq.s32.totalorder %s17, 1
    %p86 = por %p84, %p85
    %p87 = scmp.ne.s32.totalorder %s79, %s82
    %p88 = scmp.eq.s32.totalorder %s17, 0
    %p89 = por %p87, %p88
    %p90 = scmp.ne.s32.totalorder %s79, %s82
    %p91 = scmp.eq.s32.totalorder %s22, 1
    %p92 = por %p90, %p91
    %p93 = scmp.ne.s32.totalorder %s82, %s83
    %p94 = scmp.eq.s32.totalorder %s22, 0
    %p95 = por %p93, %p94
    %p96 = scmp.ne.s32.totalorder %s82, %s83
    %p97 = scmp.eq.s32.totalorder %s23, 1
    %p98 = por %p96, %p97
    %p100 = scmp.ne.s32.totalorder %s83, %s99
    %p101 = scmp.eq.s32.totalorder %s23, 0
    %p102 = por %p100, %p101
    %s104 = sadd.s32 %s103, 1
    %p107 = scmp.eq.s32.totalorder %s17, 1
    %p108 = scmp.ne.s32.totalorder %s103, %s105
    %p109 = scmp.eq.s32.totalorder %s17, 0
    %p110 = por %p108, %p109
    %p111 = scmp.ne.s32.totalorder %s103, %s105
    %p112 = scmp.eq.s32.totalorder %s22, 1
    %p113 = por %p111, %p112
    %p114 = scmp.ne.s32.totalorder %s105, %s106
    %p115 = scmp.eq.s32.totalorder %s22, 0
    %p116 = por %p114, %p115
    %p117 = scmp.ne.s32.totalorder %s105, %s106
    %p118 = scmp.eq.s32.totalorder %s23, 1
    %p119 = por %p117, %p118
    %p121 = scmp.ne.s32.totalorder %s106, %s120
    %p122 = scmp.eq.s32.totalorder %s23, 0
    %p123 = por %p121, %p122
    %s125 = sadd.s32 %s124, 1
    %p128 = scmp.eq.s32.totalorder %s17, 1
    %p129 = scmp.ne.s32.totalorder %s124, %s126
    %p130 = scmp.eq.s32.totalorder %s17, 0
    %p131 = por %p129, %p130
    %p132 = scmp.ne.s32.totalorder %s124, %s126
    %p133 = scmp.eq.s32.totalorder %s22, 1
    %p134 = por %p132, %p133
    %p135 = scmp.ne.s32.totalorder %s126, %s127
    %p136 = scmp.eq.s32.totalorder %s22, 0
    %p137 = por %p135, %p136
    %p138 = scmp.ne.s32.totalorder %s126, %s127
    %p139 = scmp.eq.s32.totalorder %s23, 1
    %p140 = por %p138, %p139
    %p142 = scmp.ne.s32.totalorder %s127, %s141
    %p143 = scmp.eq.s32.totalorder %s23, 0
    %p144 = por %p142, %p143
    %s146 = sadd.s32 %s145, 1
    %p149 = scmp.eq.s32.totalorder %s17, 1
    %p150 = scmp.ne.s32.totalorder %s145, %s147
    %p151 = scmp.eq.s32.totalorder %s17, 0
    %p152 = por %p150, %p151
    %p153 = scmp.ne.s32.totalorder %s145, %s147
    %p154 = scmp.eq.s32.totalorder %s22, 1
    %p155 = por %p153, %p154
    %p156 = scmp.ne.s32.totalorder %s147, %s148
    %p157 = scmp.eq.s32.totalorder %s22, 0
    %p158 = por %p156, %p157
    %p159 = scmp.ne.s32.totalorder %s147, %s148
    %p160 = scmp.eq.s32.totalorder %s23, 1
    %p161 = por %p159, %p160
    %p163 = scmp.ne.s32.totalorder %s148, %s162
    %p164 = scmp.eq.s32.totalorder %s23, 0
    %p165 = por %p163, %p164
    %s167 = sadd.s32 %s166, 1
    %p170 = scmp.eq.s32.totalorder %s17, 1
    %p171 = scmp.ne.s32.totalorder %s166, %s168
    %p172 = scmp.eq.s32.totalorder %s17, 0
    %p173 = por %p171, %p172
    %p174 = scmp.ne.s32.totalorder %s166, %s168
    %p175 = scmp.eq.s32.totalorder %s22, 1
    %p176 = por %p174, %p175
    %p177 = scmp.ne.s32.totalorder %s168, %s169
    %p178 = scmp.eq.s32.totalorder %s22, 0
    %p179 = por %p177, %p178
    %p180 = scmp.ne.s32.totalorder %s168, %s169
    %p181 = scmp.eq.s32.totalorder %s23, 1
    %p182 = por %p180, %p181
    %p184 = scmp.ne.s32.totalorder %s169, %s183
    %p185 = scmp.eq.s32.totalorder %s23, 0
    %p186 = por %p184, %p185
    %s188 = sadd.s32 %s187, 1
    %p191 = scmp.eq.s32.totalorder %s17, 1
    %p192 = scmp.ne.s32.totalorder %s187, %s189
    %p193 = scmp.eq.s32.totalorder %s17, 0
    %p194 = por %p192, %p193
    %p195 = scmp.ne.s32.totalorder %s187, %s189
    %p196 = scmp.eq.s32.totalorder %s22, 1
    %p197 = por %p195, %p196
    %p198 = scmp.ne.s32.totalorder %s189, %s190
    %p199 = scmp.eq.s32.totalorder %s22, 0
    %p200 = por %p198, %p199
    %p201 = scmp.ne.s32.totalorder %s189, %s190
    %p202 = scmp.eq.s32.totalorder %s23, 1
    %p203 = por %p201, %p202
    %p205 = scmp.ne.s32.totalorder %s190, %s204
    %p206 = scmp.eq.s32.totalorder %s23, 0
    %p207 = por %p205, %p206
    %s209 = sadd.s32 %s208, 1
    %p212 = scmp.eq.s32.totalorder %s17, 1
    %p213 = scmp.ne.s32.totalorder %s208, %s210
    %p214 = scmp.eq.s32.totalorder %s17, 0
    %p215 = por %p213, %p214
    %p216 = scmp.ne.s32.totalorder %s208, %s210
    %p217 = scmp.eq.s32.totalorder %s22, 1
    %p218 = por %p216, %p217
    %p219 = scmp.ne.s32.totalorder %s210, %s211
    %p220 = scmp.eq.s32.totalorder %s22, 0
    %p221 = por %p219, %p220
    %p222 = scmp.ne.s32.totalorder %s210, %s211
    %p223 = scmp.eq.s32.totalorder %s23, 1
    %p224 = por %p222, %p223
    %p226 = scmp.ne.s32.totalorder %s211, %s225
    %p227 = scmp.eq.s32.totalorder %s23, 0
    %p228 = por %p226, %p227
    %s230 = sadd.s32 %s229, 1
    %p233 = scmp.eq.s32.totalorder %s17, 1
    %p234 = scmp.ne.s32.totalorder %s229, %s231
    %p235 = scmp.eq.s32.totalorder %s17, 0
    %p236 = por %p234, %p235
    %p237 = scmp.ne.s32.totalorder %s229, %s231
    %p238 = scmp.eq.s32.totalorder %s22, 1
    %p239 = por %p237, %p238
    %p240 = scmp.ne.s32.totalorder %s231, %s232
    %p241 = scmp.eq.s32.totalorder %s22, 0
    %p242 = por %p240, %p241
    %p243 = scmp.ne.s32.totalorder %s231, %s232
    %p244 = scmp.eq.s32.totalorder %s23, 1
    %p245 = por %p243, %p244
    %p247 = scmp.ne.s32.totalorder %s232, %s246
    %p248 = scmp.eq.s32.totalorder %s23, 0
    %p249 = por %p247, %p248
    %s251 = sadd.s32 %s250, 1
    %p254 = scmp.eq.s32.totalorder %s17, 1
    %p255 = scmp.ne.s32.totalorder %s250, %s252
    %p256 = scmp.eq.s32.totalorder %s17, 0
    %p257 = por %p255, %p256
    %p258 = scmp.ne.s32.totalorder %s250, %s252
    %p259 = scmp.eq.s32.totalorder %s22, 1
    %p260 = por %p258, %p259
    %p261 = scmp.ne.s32.totalorder %s252, %s253
    %p262 = scmp.eq.s32.totalorder %s22, 0
    %p263 = por %p261, %p262
    %p264 = scmp.ne.s32.totalorder %s252, %s253
    %p265 = scmp.eq.s32.totalorder %s23, 1
    %p266 = por %p264, %p265
    %p268 = scmp.ne.s32.totalorder %s253, %s267
    %p269 = scmp.eq.s32.totalorder %s23, 0
    %p270 = por %p268, %p269
    %s271 = ssub.s32 %s17, %s24
    %p272 = scmp.eq.s32.totalorder %s271, 0
    %s274 = sadd.s32 %s273, 1
    %s275 = scalar_select %p272, %s273, %s274
    %p278 = pneg %p272
    %p279 = scmp.eq.s32.totalorder %s17, 1
    %p280 = por %p278, %p279
    %p281 = scmp.ne.s32.totalorder %s273, %s276
    %p282 = scmp.eq.s32.totalorder %s17, 0
    %p283 = por %p281, %p282
    %p284 = scmp.ne.s32.totalorder %s273, %s276
    %p285 = scmp.eq.s32.totalorder %s22, 1
    %p286 = por %p284, %p285
    %p287 = scmp.ne.s32.totalorder %s276, %s277
    %p288 = scmp.eq.s32.totalorder %s22, 0
    %p289 = por %p287, %p288
    %p290 = scmp.ne.s32.totalorder %s276, %s277
    %p291 = scmp.eq.s32.totalorder %s23, 1
    %p292 = por %p290, %p291
    %p294 = scmp.ne.s32.totalorder %s277, %s293
    %p295 = scmp.eq.s32.totalorder %s23, 0
    %p296 = por %p294, %p295
    %p297 = scmp.le.s32.totalorder 1, %s17
    %p298 = scmp.lt.s32.totalorder %s17, 3
    %p299 = pnand %p297, %p298
    %p300 = pneg %p299
    // Predicated region
    $region9: #{_lambda_.15} parent=5 // pred_check
      _
    $region10: #{_lambda_.15} parent=5 // pred_check_branch
      %302 = sbr.rel (%p299) target = $region12
    $region11: #{_lambda_.15} parent=5 // pred_region
      %s303 = ssub.s32 %s17, 1
      // Predicated region
      $region13: #{_lambda_.15} parent=11 // pred_check
        %p304 = pneg %p116
      $region14: #{_lambda_.15} parent=11 // pred_check_branch
        %306 = sbr.rel (%p304) target = $region16
      $region15: #{_lambda_.15} parent=11 // pred_region
        _
      $region16: #{_lambda_.15} parent=11 // pred_fallthru
        _
      // Predicated region
      $region17: #{_lambda_.15} parent=11 // pred_check
        %p307 = pneg %p137
      $region18: #{_lambda_.15} parent=11 // pred_check_branch
        %309 = sbr.rel (%p307) target = $region20
      $region19: #{_lambda_.15} parent=11 // pred_region
        _
      $region20: #{_lambda_.15} parent=11 // pred_fallthru
        _
      // Predicated region
      $region21: #{_lambda_.15} parent=11 // pred_check
        %p310 = pneg %p158
      $region22: #{_lambda_.15} parent=11 // pred_check_branch
        %312 = sbr.rel (%p310) target = $region24
      $region23: #{_lambda_.15} parent=11 // pred_region
        _
      $region24: #{_lambda_.15} parent=11 // pred_fallthru
        _
      // Predicated region
      $region25: #{_lambda_.15} parent=11 // pred_check
        %p313 = pneg %p179
      $region26: #{_lambda_.15} parent=11 // pred_check_branch
        %315 = sbr.rel (%p313) target = $region28
      $region27: #{_lambda_.15} parent=11 // pred_region
        _
      $region28: #{_lambda_.15} parent=11 // pred_fallthru
        _
      // Predicated region
      $region29: #{_lambda_.15} parent=11 // pred_check
        %p316 = pneg %p200
      $region30: #{_lambda_.15} parent=11 // pred_check_branch
        %318 = sbr.rel (%p316) target = $region32
      $region31: #{_lambda_.15} parent=11 // pred_region
        _
      $region32: #{_lambda_.15} parent=11 // pred_fallthru
        _
      // Predicated region
      $region33: #{_lambda_.15} parent=11 // pred_check
        %p319 = pneg %p221
      $region34: #{_lambda_.15} parent=11 // pred_check_branch
        %321 = sbr.rel (%p319) target = $region36
      $region35: #{_lambda_.15} parent=11 // pred_region
        _
      $region36: #{_lambda_.15} parent=11 // pred_fallthru
        _
      // Predicated region
      $region37: #{_lambda_.15} parent=11 // pred_check
        %p322 = pneg %p242
      $region38: #{_lambda_.15} parent=11 // pred_check_branch
        %324 = sbr.rel (%p322) target = $region40
      $region39: #{_lambda_.15} parent=11 // pred_region
        _
      $region40: #{_lambda_.15} parent=11 // pred_fallthru
        _
      // Predicated region
      $region41: #{_lambda_.15} parent=11 // pred_check
        %p325 = pneg %p263
      $region42: #{_lambda_.15} parent=11 // pred_check_branch
        %327 = sbr.rel (%p325) target = $region44
      $region43: #{_lambda_.15} parent=11 // pred_region
        _
      $region44: #{_lambda_.15} parent=11 // pred_fallthru
        _
    $region12: #{_lambda_.15} parent=5 // pred_fallthru
      _
    %p328 = scmp.lt.s32.totalorder %s17, 2
    // Predicated region
    $region45: #{_lambda_.15} parent=5 // pred_check
      %p329 = pneg %p328
    $region46: #{_lambda_.15} parent=5 // pred_check_branch
      %331 = sbr.rel (%p329) target = $region48
    $region47: #{_lambda_.15} parent=5 // pred_region
      // Predicated region
      $region49: #{_lambda_.15} parent=47 // pred_check
        %p332 = pneg %p37
      $region50: #{_lambda_.15} parent=47 // pred_check_branch
        %334 = sbr.rel (%p332) target = $region52
      $region51: #{_lambda_.15} parent=47 // pred_region
        %p335 = scmp.lt.s32.totalorder %s17, 1
        %s336 = scalar_select %p335, %s17, 1
        %s337 = smul.addr %s336, 8
        %s338 = scalar_lea.vmem %s0, %s337
      $region52: #{_lambda_.15} parent=47 // pred_fallthru
        _
      // Predicated region
      $region53: #{_lambda_.15} parent=47 // pred_check
        %p339 = pneg %p63
      $region54: #{_lambda_.15} parent=47 // pred_check_branch
        %341 = sbr.rel (%p339) target = $region56
      $region55: #{_lambda_.15} parent=47 // pred_region
        %p342 = scmp.lt.s32.totalorder %s17, 1
        %s343 = scalar_select %p342, %s17, 1
        %s344 = smul.addr %s343, 8
        %s345 = scalar_lea.vmem %s1, %s344
      $region56: #{_lambda_.15} parent=47 // pred_fallthru
        _
      // Predicated region
      $region57: #{_lambda_.15} parent=47 // pred_check
        %p346 = pneg %p89
      $region58: #{_lambda_.15} parent=47 // pred_check_branch
        %348 = sbr.rel (%p346) target = $region60
      $region59: #{_lambda_.15} parent=47 // pred_region
        %p349 = scmp.lt.s32.totalorder %s17, 1
        %s350 = scalar_select %p349, %s17, 1
        %s351 = smul.addr %s350, 8
        %s352 = scalar_lea.vmem %s2, %s351
      $region60: #{_lambda_.15} parent=47 // pred_fallthru
        _
    $region48: #{_lambda_.15} parent=5 // pred_fallthru
      _
    %p353 = scmp.le.s32.totalorder 1, %s17
    %p354 = scmp.lt.s32.totalorder %s17, 3
    %p355 = pnand %p353, %p354
    %p356 = pneg %p355
    // Predicated region
    $region61: #{_lambda_.15} parent=5 // pred_check
      _
    $region62: #{_lambda_.15} parent=5 // pred_check_branch
      %358 = sbr.rel (%p355) target = $region64
    $region63: #{_lambda_.15} parent=5 // pred_region
      %s359 = ssub.s32 %s17, 1
      %p360 = scmp.lt.s32.totalorder %s22, 1
      %s361 = scalar_select %p360, %s22, 1
      %s362 = smul.addr %s361, 8
      %s363 = scalar_lea.vmem %s0, %s362
      %p364 = pneg %p43
      %p365 = pneg %p40
      %p366 = scmp.lt.s32.totalorder %s22, 1
      %s367 = scalar_select %p366, %s22, 1
      %s368 = smul.addr %s367, 8
      %s369 = scalar_lea.vmem %s1, %s368
      %p370 = pneg %p69
      %p371 = pneg %p66
      %p372 = scmp.lt.s32.totalorder %s22, 1
      %s373 = scalar_select %p372, %s22, 1
      %s374 = smul.addr %s373, 8
      %s375 = scalar_lea.vmem %s2, %s374
      %p376 = pneg %p95
      %p377 = pneg %p92
      %p378 = pneg %p116
      %p379 = pneg %p113
      %p380 = pneg %p137
      %p381 = pneg %p134
      %p382 = pneg %p158
      %p383 = pneg %p155
      %p384 = pneg %p179
      %p385 = pneg %p176
      %p386 = pneg %p200
      %p387 = pneg %p197
      %p388 = pneg %p221
      %p389 = pneg %p218
      %p390 = pneg %p242
      %p391 = pneg %p239
      %p392 = pneg %p263
      %p393 = pneg %p260
      %p394 = pneg %p289
      %p395 = pneg %p286
      %p396 = scmp.lt.s32.totalorder %s22, 1
      %s397 = scalar_select %p396, %s22, 1
      %s398 = smul.addr %s397, 8
      %s399 = scalar_lea.vmem %s11, %s398
      %p400 = scmp.lt.s32.totalorder %s22, 1
      %s401 = scalar_select %p400, %s22, 1
      %s402 = smul.addr %s401, 8
      %s403 = scalar_lea.vmem %s0, %s402
      %p404 = scmp.lt.s32.totalorder %s22, 1
      %s405 = scalar_select %p404, %s22, 1
      %s406 = smul.addr %s405, 8
      %s407 = scalar_lea.vmem %s1, %s406
      %p408 = scmp.lt.s32.totalorder %s22, 1
      %s409 = scalar_select %p408, %s22, 1
      %s410 = smul.addr %s409, 8
      %s411 = scalar_lea.vmem %s2, %s410
      %p412 = scmp.lt.s32.totalorder %s22, 1
      %s413 = scalar_select %p412, %s22, 1
      %s414 = smul.addr %s413, 8
      %s415 = scalar_lea.vmem %s11, %s414
      %v417 = vld [vmem:[%s403] sm:$0xff]
      %v418 = vld [vmem:[%s407] sm:$0xff]
      %v419 = vpack.c.bf16 %v417, %v417
      %v420 = vld [vmem:[%s3] sm:$0xf]
      %v421 = vld [vmem:[%s3 + $0x4] sm:$0xf]
      %v422 = vld [vmem:[%s3 + $0x8] sm:$0xf]
      %v423 = vld [vmem:[%s3 + $0xc] sm:$0xf]
      %v424 = vld [vmem:[%s3 + $0x10] sm:$0xf]
      %v425 = vld [vmem:[%s3 + $0x14] sm:$0xf]
      %v426 = vld [vmem:[%s3 + $0x18] sm:$0xf]
      %v427 = vld [vmem:[%s3 + $0x1c] sm:$0xf]
      %v428 = vld [vmem:[%s3 + $0x20] sm:$0xf]
      %v429 = vld [vmem:[%s3 + $0x24] sm:$0xf]
      %v430 = vld [vmem:[%s3 + $0x28] sm:$0xf]
      %v431 = vld [vmem:[%s3 + $0x2c] sm:$0xf]
      %v432 = vld [vmem:[%s3 + $0x30] sm:$0xf]
      %v433 = vld [vmem:[%s3 + $0x34] sm:$0xf]
      %v434 = vld [vmem:[%s3 + $0x38] sm:$0xf]
      %v435 = vld [vmem:[%s3 + $0x3c] sm:$0xf]
      %v436 = vld [vmem:[%s4] sm:$0x1]
      %v438 = vlaneseq
      %v439 = vshrl.u32 %v438, 7
      %v440 = vsub.s32 0, %v439
      %v441 = vrot.slane %v436, %v440
      %v459 = vunpack.c.l.b16 %v420
      %v460 = vunpack.c.l.b16 %v421
      %v461 = vunpack.c.l.b16 %v422
      %v462 = vunpack.c.l.b16 %v423
      %v463 = vunpack.c.l.b16 %v424
      %v464 = vunpack.c.l.b16 %v425
      %v465 = vunpack.c.l.b16 %v426
      %v466 = vunpack.c.l.b16 %v427
      %v467 = vunpack.c.l.b16 %v428
      %v468 = vunpack.c.l.b16 %v429
      %v469 = vunpack.c.l.b16 %v430
      %v470 = vunpack.c.l.b16 %v431
      %v471 = vunpack.c.l.b16 %v432
      %v472 = vunpack.c.l.b16 %v433
      %v473 = vunpack.c.l.b16 %v434
      %v474 = vunpack.c.l.b16 %v435
      %v475 = vpack.c.b16 %v460, %v459
      %v476 = vpack.c.b16 %v462, %v461
      %v477 = vpack.c.b16 %v464, %v463
      %v478 = vpack.c.b16 %v466, %v465
      %v479 = vpack.c.b16 %v468, %v467
      %v480 = vpack.c.b16 %v470, %v469
      %v481 = vpack.c.b16 %v472, %v471
      %v482 = vpack.c.b16 %v474, %v473
      %491 = vmatprep.subr.bf16.mxu0 0
      %492 = vmatpush1.bf16.msra.mxu0 %v475
      %493 = vmatprep.subr.bf16.mxu0 0
      %494 = vmatpush1.bf16.msra.mxu0 %v476
      %495 = vmatprep.subr.bf16.mxu0 0
      %496 = vmatpush1.bf16.msra.mxu0 %v477
      %497 = vmatprep.subr.bf16.mxu0 0
      %498 = vmatpush1.bf16.msra.mxu0 %v478
      %499 = vmatprep.subr.bf16.mxu0 0
      %500 = vmatpush1.bf16.msra.mxu0 %v479
      %501 = vmatprep.subr.bf16.mxu0 0
      %502 = vmatpush1.bf16.msra.mxu0 %v480
      %503 = vmatprep.subr.bf16.mxu0 0
      %504 = vmatpush1.bf16.msra.mxu0 %v481
      %505 = vmatprep.subr.bf16.mxu0 0
      %506 = vmatpush1.bf16.msra.mxu0 %v482
      %507 = vmatprep.subr.bf16.mxu0 0
      %508 = vmatpush1.bf16.msra.mxu0 0
      %509 = vmatprep.subr.bf16.mxu0 0
      %510 = vmatpush1.bf16.msra.mxu0 0
      %511 = vmatprep.subr.bf16.mxu0 0
      %512 = vmatpush1.bf16.msra.mxu0 0
      %513 = vmatprep.subr.bf16.mxu0 0
      %514 = vmatpush1.bf16.msra.mxu0 0
      %515 = vmatprep.subr.bf16.mxu0 0
      %516 = vmatpush1.bf16.msra.mxu0 0
      %517 = vmatprep.subr.bf16.mxu0 0
      %518 = vmatpush1.bf16.msra.mxu0 0
      %519 = vmatprep.subr.bf16.mxu0 0
      %520 = vmatpush1.bf16.msra.mxu0 0
      %521 = vmatprep.subr.bf16.mxu0 0
      %522 = vmatpush1.bf16.msra.mxu0 0
      %523 = vmatprep.mubr.bf16.mxu0 0
      %524 = vmatmul.mubr.bf16.gmra.mrb[0].mxu0 %v419
      %v525 = vpop.f32.mrb[0].mxu0
      %v526 = vadd.f32 %v441, %v525
      %v527 = vpop.f32.mrb[0].mxu0
      %v528 = vpop.f32.mrb[0].mxu0
      %v529 = vpop.f32.mrb[0].mxu0
      %530 = vdwg.mxu0
      %v531 = vpack.c.bf16 %v418, %v418
      %v532 = vld [vmem:[%s5] sm:$0xff]
      %v533 = vld [vmem:[%s5 + $0x8] sm:$0xff]
      %v534 = vld [vmem:[%s5 + $0x10] sm:$0xff]
      %v535 = vld [vmem:[%s5 + $0x18] sm:$0xff]
      %v536 = vld [vmem:[%s5 + $0x20] sm:$0xff]
      %v537 = vld [vmem:[%s5 + $0x28] sm:$0xff]
      %v538 = vld [vmem:[%s5 + $0x30] sm:$0xff]
      %v539 = vld [vmem:[%s5 + $0x38] sm:$0xff]
      %v540 = vld [vmem:[%s5 + $0x40] sm:$0xff]
      %v541 = vld [vmem:[%s5 + $0x48] sm:$0xff]
      %v542 = vld [vmem:[%s5 + $0x50] sm:$0xff]
      %v543 = vld [vmem:[%s5 + $0x58] sm:$0xff]
      %v544 = vld [vmem:[%s5 + $0x60] sm:$0xff]
      %v545 = vld [vmem:[%s5 + $0x68] sm:$0xff]
      %v546 = vld [vmem:[%s5 + $0x70] sm:$0xff]
      %v547 = vld [vmem:[%s5 + $0x78] sm:$0xff]
      %v548 = vld [vmem:[%s6] sm:$0x3]
      %v550 = vlaneseq
      %v551 = vshrl.u32 %v550, 7
      %v552 = vsub.s32 0, %v551
      %v553 = vrot.slane %v548, %v552
      %v554 = vlaneseq
      %v555 = vshrl.u32 %v554, 7
      %v556 = vsub.s32 1, %v555
      %v557 = vrot.slane %v548, %v556
      %v576 = vunpack.c.l.b16 %v532
      %v577 = vunpack.c.h.b16 %v532
      %v578 = vunpack.c.l.b16 %v533
      %v579 = vunpack.c.h.b16 %v533
      %v580 = vunpack.c.l.b16 %v534
      %v581 = vunpack.c.h.b16 %v534
      %v582 = vunpack.c.l.b16 %v535
      %v583 = vunpack.c.h.b16 %v535
      %v584 = vunpack.c.l.b16 %v536
      %v585 = vunpack.c.h.b16 %v536
      %v586 = vunpack.c.l.b16 %v537
      %v587 = vunpack.c.h.b16 %v537
      %v588 = vunpack.c.l.b16 %v538
      %v589 = vunpack.c.h.b16 %v538
      %v590 = vunpack.c.l.b16 %v539
      %v591 = vunpack.c.h.b16 %v539
      %v592 = vunpack.c.l.b16 %v540
      %v593 = vunpack.c.h.b16 %v540
      %v594 = vunpack.c.l.b16 %v541
      %v595 = vunpack.c.h.b16 %v541
      %v596 = vunpack.c.l.b16 %v542
      %v597 = vunpack.c.h.b16 %v542
      %v598 = vunpack.c.l.b16 %v543
      %v599 = vunpack.c.h.b16 %v543
      %v600 = vunpack.c.l.b16 %v544
      %v601 = vunpack.c.h.b16 %v544
      %v602 = vunpack.c.l.b16 %v545
      %v603 = vunpack.c.h.b16 %v545
      %v604 = vunpack.c.l.b16 %v546
      %v605 = vunpack.c.h.b16 %v546
      %v606 = vunpack.c.l.b16 %v547
      %v607 = vunpack.c.h.b16 %v547
      %v608 = vpack.c.b16 %v578, %v576
      %v609 = vpack.c.b16 %v579, %v577
      %v610 = vpack.c.b16 %v582, %v580
      %v611 = vpack.c.b16 %v583, %v581
      %v612 = vpack.c.b16 %v586, %v584
      %v613 = vpack.c.b16 %v587, %v585
      %v614 = vpack.c.b16 %v590, %v588
      %v615 = vpack.c.b16 %v591, %v589
      %v616 = vpack.c.b16 %v594, %v592
      %v617 = vpack.c.b16 %v595, %v593
      %v618 = vpack.c.b16 %v598, %v596
      %v619 = vpack.c.b16 %v599, %v597
      %v620 = vpack.c.b16 %v602, %v600
      %v621 = vpack.c.b16 %v603, %v601
      %v622 = vpack.c.b16 %v606, %v604
      %v623 = vpack.c.b16 %v607, %v605
      %640 = vmatprep.subr.bf16.mxu0 %v609
      %641 = vmatpush1.bf16.msra.mxu0 %v608
      %642 = vmatprep.subr.bf16.mxu0 %v611
      %643 = vmatpush1.bf16.msra.mxu0 %v610
      %644 = vmatprep.subr.bf16.mxu0 %v613
      %645 = vmatpush1.bf16.msra.mxu0 %v612
      %646 = vmatprep.subr.bf16.mxu0 %v615
      %647 = vmatpush1.bf16.msra.mxu0 %v614
      %648 = vmatprep.subr.bf16.mxu0 %v617
      %649 = vmatpush1.bf16.msra.mxu0 %v616
      %650 = vmatprep.subr.bf16.mxu0 %v619
      %651 = vmatpush1.bf16.msra.mxu0 %v618
      %652 = vmatprep.subr.bf16.mxu0 %v621
      %653 = vmatpush1.bf16.msra.mxu0 %v620
      %654 = vmatprep.subr.bf16.mxu0 %v623
      %655 = vmatpush1.bf16.msra.mxu0 %v622
      %656 = vmatprep.subr.bf16.mxu0 0
      %657 = vmatpush1.bf16.msra.mxu0 0
      %658 = vmatprep.subr.bf16.mxu0 0
      %659 = vmatpush1.bf16.msra.mxu0 0
      %660 = vmatprep.subr.bf16.mxu0 0
      %661 = vmatpush1.bf16.msra.mxu0 0
      %662 = vmatprep.subr.bf16.mxu0 0
      %663 = vmatpush1.bf16.msra.mxu0 0
      %664 = vmatprep.subr.bf16.mxu0 0
      %665 = vmatpush1.bf16.msra.mxu0 0
      %666 = vmatprep.subr.bf16.mxu0 0
      %667 = vmatpush1.bf16.msra.mxu0 0
      %668 = vmatprep.subr.bf16.mxu0 0
      %669 = vmatpush1.bf16.msra.mxu0 0
      %670 = vmatprep.subr.bf16.mxu0 0
      %671 = vmatpush1.bf16.msra.mxu0 0
      %672 = vmatprep.mubr.bf16.mxu0 0
      %673 = vmatmul.mubr.bf16.gmra.mrb[0].mxu0 %v531
      %v674 = vpop.f32.mrb[0].mxu0
      %v675 = vadd.f32 %v553, %v674
      %v676 = vpop.f32.mrb[0].mxu0
      %v677 = vadd.f32 %v557, %v676
      %v678 = vpop.f32.mrb[0].mxu0
      %v679 = vpop.f32.mrb[0].mxu0
      %680 = vdwg.mxu0
      %v681 = vld [vmem:[%s411] sm:$0xff]
      %v682 = vpack.c.bf16 %v526, %v526
      %v683 = vpack.c.bf16 %v675, %v675
      %v684 = vpack.c.bf16 %v677, %v677
      %vm685 = vcmask 261120
      %v687 = vsel %vm685, %v682, 0
      %v690 = vsel %vm685, %v683, 0
      %692 = vmatprep.subr.bf16.mxu0 0
      %693 = vmatpush1.bf16.xpose.msra.mxu0 %v690
      %694 = vmatprep.subr.bf16.mxu0 0
      %695 = vmatpush1.bf16.xpose.msra.mxu0 0
      %696 = vmatprep.subr.bf16.mxu0 0
      %697 = vmatpush1.bf16.xpose.msra.mxu0 0
      %698 = vmatprep.subr.bf16.mxu0 0
      %699 = vmatpush1.bf16.xpose.msra.mxu0 0
      %700 = vmatprep.subr.bf16.mxu0 0
      %701 = vmatpush1.bf16.xpose.msra.mxu0 0
      %702 = vmatprep.subr.bf16.mxu0 0
      %703 = vmatpush1.bf16.xpose.msra.mxu0 0
      %704 = vmatprep.subr.bf16.mxu0 0
      %705 = vmatpush1.bf16.xpose.msra.mxu0 0
      %706 = vmatprep.subr.bf16.mxu0 0
      %707 = vmatpush1.bf16.xpose.msra.mxu0 0
      %708 = vmatprep.subr.bf16.mxu0 0
      %709 = vmatpush1.bf16.xpose.msra.mxu0 0
      %710 = vmatprep.subr.bf16.mxu0 0
      %711 = vmatpush1.bf16.xpose.msra.mxu0 0
      %712 = vmatprep.subr.bf16.mxu0 0
      %713 = vmatpush1.bf16.xpose.msra.mxu0 0
      %714 = vmatprep.subr.bf16.mxu0 0
      %715 = vmatpush1.bf16.xpose.msra.mxu0 0
      %716 = vmatprep.subr.bf16.mxu0 0
      %717 = vmatpush1.bf16.xpose.msra.mxu0 0
      %718 = vmatprep.subr.bf16.mxu0 0
      %719 = vmatpush1.bf16.xpose.msra.mxu0 0
      %720 = vmatprep.subr.bf16.mxu0 0
      %721 = vmatpush1.bf16.xpose.msra.mxu0 0
      %722 = vmatprep.subr.bf16.mxu0 0
      %723 = vmatpush1.bf16.xpose.msra.mxu0 0
      %724 = vmatprep.mubr.bf16.mxu0 0
      %725 = vmatmul.mubr.bf16.gmra.mrb[0].mxu0 %v687
      %v726 = vpop.f32.mrb[0].mxu0
      %v727 = vadd.f32 0.0, %v726
      %v728 = vpop.f32.mrb[0].mxu0
      %v729 = vpop.f32.mrb[0].mxu0
      %v730 = vpop.f32.mrb[0].mxu0
      %731 = vdwg.mxu0
      %v732 = vmul.f32 %v727, 0.17677669
      %vm733 = vcmp.eq.s32.totalorder %v681, 0
      %v734 = vsel %vm733, -10000.0, %v732
      %vm735 = vcmask 64512
      %v736 = vsel %vm735, %v734, -inf
      %737 = vmax.xlane.f32.xlu0 %v736
      %v738 = vpop.xlane.xlu0 %737
      %v739 = vsub.f32 %v734, %v738
      %v740 = vmul.f32 %v739, 1.442695
      %v741 = vpow.pop %v740
      %v742 = vsel %vm735, %v741, 0.0
      %743 = vadd.xlane.f32.xlu0 %v742
      %v744 = vpop.xlane.xlu0 %743
      %v745 = vrcp.pop %v744
      %v746 = vmul.f32 %v741, %v745
      %v747 = vpack.c.bf16 %v746, %v746
      %v749 = vsel %vm735, %v747, 0
      %vm751 = vcmask 1043456
      %v753 = vsel %vm751, %v684, 0
      %755 = vmatprep.subr.bf16.mxu0 0
      %756 = vmatpush1.bf16.msra.mxu0 %v753
      %757 = vmatprep.subr.bf16.mxu0 0
      %758 = vmatpush1.bf16.msra.mxu0 0
      %759 = vmatprep.subr.bf16.mxu0 0
      %760 = vmatpush1.bf16.msra.mxu0 0
      %761 = vmatprep.subr.bf16.mxu0 0
      %762 = vmatpush1.bf16.msra.mxu0 0
      %763 = vmatprep.subr.bf16.mxu0 0
      %764 = vmatpush1.bf16.msra.mxu0 0
      %765 = vmatprep.subr.bf16.mxu0 0
      %766 = vmatpush1.bf16.msra.mxu0 0
      %767 = vmatprep.subr.bf16.mxu0 0
      %768 = vmatpush1.bf16.msra.mxu0 0
      %769 = vmatprep.subr.bf16.mxu0 0
      %770 = vmatpush1.bf16.msra.mxu0 0
      %771 = vmatprep.subr.bf16.mxu0 0
      %772 = vmatpush1.bf16.msra.mxu0 0
      %773 = vmatprep.subr.bf16.mxu0 0
      %774 = vmatpush1.bf16.msra.mxu0 0
      %775 = vmatprep.subr.bf16.mxu0 0
      %776 = vmatpush1.bf16.msra.mxu0 0
      %777 = vmatprep.subr.bf16.mxu0 0
      %778 = vmatpush1.bf16.msra.mxu0 0
      %779 = vmatprep.subr.bf16.mxu0 0
      %780 = vmatpush1.bf16.msra.mxu0 0
      %781 = vmatprep.subr.bf16.mxu0 0
      %782 = vmatpush1.bf16.msra.mxu0 0
      %783 = vmatprep.subr.bf16.mxu0 0
      %784 = vmatpush1.bf16.msra.mxu0 0
      %785 = vmatprep.subr.bf16.mxu0 0
      %786 = vmatpush1.bf16.msra.mxu0 0
      %787 = vmatprep.mubr.bf16.mxu0 0
      %788 = vmatmul.mubr.bf16.gmra.mrb[0].mxu0 %v749
      %v789 = vpop.f32.mrb[0].mxu0
      %v790 = vadd.f32 0.0, %v789
      %v791 = vpop.f32.mrb[0].mxu0
      %v792 = vpop.f32.mrb[0].mxu0
      %v793 = vpop.f32.mrb[0].mxu0
      %794 = vdwg.mxu0
      %796 = vrot.lane.b32.xlu0 %v682, 96
      %v797 = vpop.permute.xlu0 %796
      %799 = vrot.lane.b32.xlu0 %v683, 96
      %v800 = vpop.permute.xlu0 %799
      %v802 = vsel %vm685, %v797, 0
      %v805 = vsel %vm685, %v800, 0
      %807 = vmatprep.subr.bf16.mxu0 0
      %808 = vmatpush1.bf16.xpose.msra.mxu0 %v805
      %809 = vmatprep.subr.bf16.mxu0 0
      %810 = vmatpush1.bf16.xpose.msra.mxu0 0
      %811 = vmatprep.subr.bf16.mxu0 0
      %812 = vmatpush1.bf16.xpose.msra.mxu0 0
      %813 = vmatprep.subr.bf16.mxu0 0
      %814 = vmatpush1.bf16.xpose.msra.mxu0 0
      %815 = vmatprep.subr.bf16.mxu0 0
      %816 = vmatpush1.bf16.xpose.msra.mxu0 0
      %817 = vmatprep.subr.bf16.mxu0 0
      %818 = vmatpush1.bf16.xpose.msra.mxu0 0
      %819 = vmatprep.subr.bf16.mxu0 0
      %820 = vmatpush1.bf16.xpose.msra.mxu0 0
      %821 = vmatprep.subr.bf16.mxu0 0
      %822 = vmatpush1.bf16.xpose.msra.mxu0 0
      %823 = vmatprep.subr.bf16.mxu0 0
      %824 = vmatpush1.bf16.xpose.msra.mxu0 0
      %825 = vmatprep.subr.bf16.mxu0 0
      %826 = vmatpush1.bf16.xpose.msra.mxu0 0
      %827 = vmatprep.subr.bf16.mxu0 0
      %828 = vmatpush1.bf16.xpose.msra.mxu0 0
      %829 = vmatprep.subr.bf16.mxu0 0
      %830 = vmatpush1.bf16.xpose.msra.mxu0 0
      %831 = vmatprep.subr.bf16.mxu0 0
      %832 = vmatpush1.bf16.xpose.msra.mxu0 0
      %833 = vmatprep.subr.bf16.mxu0 0
      %834 = vmatpush1.bf16.xpose.msra.mxu0 0
      %835 = vmatprep.subr.bf16.mxu0 0
      %836 = vmatpush1.bf16.xpose.msra.mxu0 0
      %837 = vmatprep.subr.bf16.mxu0 0
      %838 = vmatpush1.bf16.xpose.msra.mxu0 0
      %839 = vmatprep.mubr.bf16.mxu0 0
      %840 = vmatmul.mubr.bf16.gmra.mrb[0].mxu0 %v802
      %v841 = vpop.f32.mrb[0].mxu0
      %v842 = vadd.f32 0.0, %v841
      %v843 = vpop.f32.mrb[0].mxu0
      %v844 = vpop.f32.mrb[0].mxu0
      %v845 = vpop.f32.mrb[0].mxu0
      %846 = vdwg.mxu0
      %v847 = vmul.f32 %v842, 0.17677669
      %v848 = vsel %vm733, -10000.0, %v847
      %v849 = vsel %vm735, %v848, -inf
      %850 = vmax.xlane.f32.xlu0 %v849
      %v851 = vpop.xlane.xlu0 %850
      %v852 = vsub.f32 %v848, %v851
      %v853 = vmul.f32 %v852, 1.442695
      %v854 = vpow.pop %v853
      %v855 = vsel %vm735, %v854, 0.0
      %856 = vadd.xlane.f32.xlu0 %v855
      %v857 = vpop.xlane.xlu0 %856
      %v858 = vrcp.pop %v857
      %v859 = vmul.f32 %v854, %v858
      %v860 = vpack.c.bf16 %v859, %v859
      %862 = vrot.lane.b32.xlu0 %v684, 96
      %v863 = vpop.permute.xlu0 %862
      %v865 = vsel %vm735, %v860, 0
      %v868 = vsel %vm751, %v863, 0
      %870 = vmatprep.subr.bf16.mxu0 0
      %871 = vmatpush1.bf16.msra.mxu0 %v868
      %872 = vmatprep.subr.bf16.mxu0 0
      %873 = vmatpush1.bf16.msra.mxu0 0
      %874 = vmatprep.subr.bf16.mxu0 0
      %875 = vmatpush1.bf16.msra.mxu0 0
      %876 = vmatprep.subr.bf16.mxu0 0
      %877 = vmatpush1.bf16.msra.mxu0 0
      %878 = vmatprep.subr.bf16.mxu0 0
      %879 = vmatpush1.bf16.msra.mxu0 0
      %880 = vmatprep.subr.bf16.mxu0 0
      %881 = vmatpush1.bf16.msra.mxu0 0
      %882 = vmatprep.subr.bf16.mxu0 0
      %883 = vmatpush1.bf16.msra.mxu0 0
      %884 = vmatprep.subr.bf16.mxu0 0
      %885 = vmatpush1.bf16.msra.mxu0 0
      %886 = vmatprep.subr.bf16.mxu0 0
      %887 = vmatpush1.bf16.msra.mxu0 0
      %888 = vmatprep.subr.bf16.mxu0 0
      %889 = vmatpush1.bf16.msra.mxu0 0
      %890 = vmatprep.subr.bf16.mxu0 0
      %891 = vmatpush1.bf16.msra.mxu0 0
      %892 = vmatprep.subr.bf16.mxu0 0
      %893 = vmatpush1.bf16.msra.mxu0 0
      %894 = vmatprep.subr.bf16.mxu0 0
      %895 = vmatpush1.bf16.msra.mxu0 0
      %896 = vmatprep.subr.bf16.mxu0 0
      %897 = vmatpush1.bf16.msra.mxu0 0
      %898 = vmatprep.subr.bf16.mxu0 0
      %899 = vmatpush1.bf16.msra.mxu0 0
      %900 = vmatprep.subr.bf16.mxu0 0
      %901 = vmatpush1.bf16.msra.mxu0 0
      %902 = vmatprep.mubr.bf16.mxu0 0
      %903 = vmatmul.mubr.bf16.gmra.mrb[0].mxu0 %v865
      %v904 = vpop.f32.mrb[0].mxu0
      %v905 = vadd.f32 0.0, %v904
      %v906 = vpop.f32.mrb[0].mxu0
      %v907 = vpop.f32.mrb[0].mxu0
      %v908 = vpop.f32.mrb[0].mxu0
      %909 = vdwg.mxu0
      %910 = vrot.lane.b32.xlu0 %v682, 64
      %v911 = vpop.permute.xlu0 %910
      %912 = vrot.lane.b32.xlu0 %v683, 64
      %v913 = vpop.permute.xlu0 %912
      %v915 = vsel %vm685, %v911, 0
      %v918 = vsel %vm685, %v913, 0
      %920 = vmatprep.subr.bf16.mxu0 0
      %921 = vmatpush1.bf16.xpose.msra.mxu0 %v918
      %922 = vmatprep.subr.bf16.mxu0 0
      %923 = vmatpush1.bf16.xpose.msra.mxu0 0
      %924 = vmatprep.subr.bf16.mxu0 0
      %925 = vmatpush1.bf16.xpose.msra.mxu0 0
      %926 = vmatprep.subr.bf16.mxu0 0
      %927 = vmatpush1.bf16.xpose.msra.mxu0 0
      %928 = vmatprep.subr.bf16.mxu0 0
      %929 = vmatpush1.bf16.xpose.msra.mxu0 0
      %930 = vmatprep.subr.bf16.mxu0 0
      %931 = vmatpush1.bf16.xpose.msra.mxu0 0
      %932 = vmatprep.subr.bf16.mxu0 0
      %933 = vmatpush1.bf16.xpose.msra.mxu0 0
      %934 = vmatprep.subr.bf16.mxu0 0
      %935 = vmatpush1.bf16.xpose.msra.mxu0 0
      %936 = vmatprep.subr.bf16.mxu0 0
      %937 = vmatpush1.bf16.xpose.msra.mxu0 0
      %938 = vmatprep.subr.bf16.mxu0 0
      %939 = vmatpush1.bf16.xpose.msra.mxu0 0
      %940 = vmatprep.subr.bf16.mxu0 0
      %941 = vmatpush1.bf16.xpose.msra.mxu0 0
      %942 = vmatprep.subr.bf16.mxu0 0
      %943 = vmatpush1.bf16.xpose.msra.mxu0 0
      %944 = vmatprep.subr.bf16.mxu0 0
      %945 = vmatpush1.bf16.xpose.msra.mxu0 0
      %946 = vmatprep.subr.bf16.mxu0 0
      %947 = vmatpush1.bf16.xpose.msra.mxu0 0
      %948 = vmatprep.subr.bf16.mxu0 0
      %949 = vmatpush1.bf16.xpose.msra.mxu0 0
      %950 = vmatprep.subr.bf16.mxu0 0
      %951 = vmatpush1.bf16.xpose.msra.mxu0 0
      %952 = vmatprep.mubr.bf16.mxu0 0
      %953 = vmatmul.mubr.bf16.gmra.mrb[0].mxu0 %v915
      %v954 = vpop.f32.mrb[0].mxu0
      %v955 = vadd.f32 0.0, %v954
      %v956 = vpop.f32.mrb[0].mxu0
      %v957 = vpop.f32.mrb[0].mxu0
      %v958 = vpop.f32.mrb[0].mxu0
      %959 = vdwg.mxu0
      %v960 = vmul.f32 %v955, 0.17677669
      %v961 = vsel %vm733, -10000.0, %v960
      %v962 = vsel %vm735, %v961, -inf
      %963 = vmax.xlane.f32.xlu0 %v962
      %v964 = vpop.xlane.xlu0 %963
      %v965 = vsub.f32 %v961, %v964
      %v966 = vmul.f32 %v965, 1.442695
      %v967 = vpow.pop %v966
      %v968 = vsel %vm735, %v967, 0.0
      %969 = vadd.xlane.f32.xlu0 %v968
      %v970 = vpop.xlane.xlu0 %969
      %v971 = vrcp.pop %v970
      %v972 = vmul.f32 %v967, %v971
      %v973 = vpack.c.bf16 %v972, %v972
      %974 = vrot.lane.b32.xlu0 %v684, 64
      %v975 = vpop.permute.xlu0 %974
      %v977 = vsel %vm735, %v973, 0
      %v980 = vsel %vm751, %v975, 0
      %982 = vmatprep.subr.bf16.mxu0 0
      %983 = vmatpush1.bf16.msra.mxu0 %v980
      %984 = vmatprep.subr.bf16.mxu0 0
      %985 = vmatpush1.bf16.msra.mxu0 0
      %986 = vmatprep.subr.bf16.mxu0 0
      %987 = vmatpush1.bf16.msra.mxu0 0
      %988 = vmatprep.subr.bf16.mxu0 0
      %989 = vmatpush1.bf16.msra.mxu0 0
      %990 = vmatprep.subr.bf16.mxu0 0
      %991 = vmatpush1.bf16.msra.mxu0 0
      %992 = vmatprep.subr.bf16.mxu0 0
      %993 = vmatpush1.bf16.msra.mxu0 0
      %994 = vmatprep.subr.bf16.mxu0 0
      %995 = vmatpush1.bf16.msra.mxu0 0
      %996 = vmatprep.subr.bf16.mxu0 0
      %997 = vmatpush1.bf16.msra.mxu0 0
      %998 = vmatprep.subr.bf16.mxu0 0
      %999 = vmatpush1.bf16.msra.mxu0 0
      %1000 = vmatprep.subr.bf16.mxu0 0
      %1001 = vmatpush1.bf16.msra.mxu0 0
      %1002 = vmatprep.subr.bf16.mxu0 0
      %1003 = vmatpush1.bf16.msra.mxu0 0
      %1004 = vmatprep.subr.bf16.mxu0 0
      %1005 = vmatpush1.bf16.msra.mxu0 0
      %1006 = vmatprep.subr.bf16.mxu0 0
      %1007 = vmatpush1.bf16.msra.mxu0 0
      %1008 = vmatprep.subr.bf16.mxu0 0
      %1009 = vmatpush1.bf16.msra.mxu0 0
      %1010 = vmatprep.subr.bf16.mxu0 0
      %1011 = vmatpush1.bf16.msra.mxu0 0
      %1012 = vmatprep.subr.bf16.mxu0 0
      %1013 = vmatpush1.bf16.msra.mxu0 0
      %1014 = vmatprep.mubr.bf16.mxu0 0
      %1015 = vmatmul.mubr.bf16.gmra.mrb[0].mxu0 %v977
      %v1016 = vpop.f32.mrb[0].mxu0
      %v1017 = vadd.f32 0.0, %v1016
      %v1018 = vpop.f32.mrb[0].mxu0
      %v1019 = vpop.f32.mrb[0].mxu0
      %v1020 = vpop.f32.mrb[0].mxu0
      %1021 = vdwg.mxu0
      %1022 = vrot.lane.b32.xlu0 %v682, 32
      %v1023 = vpop.permute.xlu0 %1022
      %1024 = vrot.lane.b32.xlu0 %v683, 32
      %v1025 = vpop.permute.xlu0 %1024
      %v1027 = vsel %vm685, %v1023, 0
      %v1030 = vsel %vm685, %v1025, 0
      %1032 = vmatprep.subr.bf16.mxu0 0
      %1033 = vmatpush1.bf16.xpose.msra.mxu0 %v1030
      %1034 = vmatprep.subr.bf16.mxu0 0
      %1035 = vmatpush1.bf16.xpose.msra.mxu0 0
      %1036 = vmatprep.subr.bf16.mxu0 0
      %1037 = vmatpush1.bf16.xpose.msra.mxu0 0
      %1038 = vmatprep.subr.bf16.mxu0 0
      %1039 = vmatpush1.bf16.xpose.msra.mxu0 0
      %1040 = vmatprep.subr.bf16.mxu0 0
      %1041 = vmatpush1.bf16.xpose.msra.mxu0 0
      %1042 = vmatprep.subr.bf16.mxu0 0
      %1043 = vmatpush1.bf16.xpose.msra.mxu0 0
      %1044 = vmatprep.subr.bf16.mxu0 0
      %1045 = vmatpush1.bf16.xpose.msra.mxu0 0
      %1046 = vmatprep.subr.bf16.mxu0 0
      %1047 = vmatpush1.bf16.xpose.msra.mxu0 0
      %1048 = vmatprep.subr.bf16.mxu0 0
      %1049 = vmatpush1.bf16.xpose.msra.mxu0 0
      %1050 = vmatprep.subr.bf16.mxu0 0
      %1051 = vmatpush1.bf16.xpose.msra.mxu0 0
      %1052 = vmatprep.subr.bf16.mxu0 0
      %1053 = vmatpush1.bf16.xpose.msra.mxu0 0
      %1054 = vmatprep.subr.bf16.mxu0 0
      %1055 = vmatpush1.bf16.xpose.msra.mxu0 0
      %1056 = vmatprep.subr.bf16.mxu0 0
      %1057 = vmatpush1.bf16.xpose.msra.mxu0 0
      %1058 = vmatprep.subr.bf16.mxu0 0
      %1059 = vmatpush1.bf16.xpose.msra.mxu0 0
      %1060 = vmatprep.subr.bf16.mxu0 0
      %1061 = vmatpush1.bf16.xpose.msra.mxu0 0
      %1062 = vmatprep.subr.bf16.mxu0 0
      %1063 = vmatpush1.bf16.xpose.msra.mxu0 0
      %1064 = vmatprep.mubr.bf16.mxu0 0
      %1065 = vmatmul.mubr.bf16.gmra.mrb[0].mxu0 %v1027
      %v1066 = vpop.f32.mrb[0].mxu0
      %v1067 = vadd.f32 0.0, %v1066
      %v1068 = vpop.f32.mrb[0].mxu0
      %v1069 = vpop.f32.mrb[0].mxu0
      %v1070 = vpop.f32.mrb[0].mxu0
      %1071 = vdwg.mxu0
      %v1072 = vmul.f32 %v1067, 0.17677669
      %v1073 = vsel %vm733, -10000.0, %v1072
      %v1074 = vsel %vm735, %v1073, -inf
      %1075 = vmax.xlane.f32.xlu0 %v1074
      %v1076 = vpop.xlane.xlu0 %1075
      %v1077 = vsub.f32 %v1073, %v1076
      %v1078 = vmul.f32 %v1077, 1.442695
      %v1079 = vpow.pop %v1078
      %v1080 = vsel %vm735, %v1079, 0.0
      %1081 = vadd.xlane.f32.xlu0 %v1080
      %v1082 = vpop.xlane.xlu0 %1081
      %v1083 = vrcp.pop %v1082
      %v1084 = vmul.f32 %v1079, %v1083
      %v1085 = vpack.c.bf16 %v1084, %v1084
      %1086 = vrot.lane.b32.xlu0 %v684, 32
      %v1087 = vpop.permute.xlu0 %1086
      %v1089 = vsel %vm735, %v1085, 0
      %v1092 = vsel %vm751, %v1087, 0
      %1094 = vmatprep.subr.bf16.mxu0 0
      %1095 = vmatpush1.bf16.msra.mxu0 %v1092
      %1096 = vmatprep.subr.bf16.mxu0 0
      %1097 = vmatpush1.bf16.msra.mxu0 0
      %1098 = vmatprep.subr.bf16.mxu0 0
      %1099 = vmatpush1.bf16.msra.mxu0 0
      %1100 = vmatprep.subr.bf16.mxu0 0
      %1101 = vmatpush1.bf16.msra.mxu0 0
      %1102 = vmatprep.subr.bf16.mxu0 0
      %1103 = vmatpush1.bf16.msra.mxu0 0
      %1104 = vmatprep.subr.bf16.mxu0 0
      %1105 = vmatpush1.bf16.msra.mxu0 0
      %1106 = vmatprep.subr.bf16.mxu0 0
      %1107 = vmatpush1.bf16.msra.mxu0 0
      %1108 = vmatprep.subr.bf16.mxu0 0
      %1109 = vmatpush1.bf16.msra.mxu0 0
      %1110 = vmatprep.subr.bf16.mxu0 0
      %1111 = vmatpush1.bf16.msra.mxu0 0
      %1112 = vmatprep.subr.bf16.mxu0 0
      %1113 = vmatpush1.bf16.msra.mxu0 0
      %1114 = vmatprep.subr.bf16.mxu0 0
      %1115 = vmatpush1.bf16.msra.mxu0 0
      %1116 = vmatprep.subr.bf16.mxu0 0
      %1117 = vmatpush1.bf16.msra.mxu0 0
      %1118 = vmatprep.subr.bf16.mxu0 0
      %1119 = vmatpush1.bf16.msra.mxu0 0
      %1120 = vmatprep.subr.bf16.mxu0 0
      %1121 = vmatpush1.bf16.msra.mxu0 0
      %1122 = vmatprep.subr.bf16.mxu0 0
      %1123 = vmatpush1.bf16.msra.mxu0 0
      %1124 = vmatprep.subr.bf16.mxu0 0
      %1125 = vmatpush1.bf16.msra.mxu0 0
      %1126 = vmatprep.mubr.bf16.mxu0 0
      %1127 = vmatmul.mubr.bf16.gmra.mrb[0].mxu0 %v1089
      %v1128 = vpop.f32.mrb[0].mxu0
      %v1129 = vadd.f32 0.0, %v1128
      %v1130 = vpop.f32.mrb[0].mxu0
      %v1131 = vpop.f32.mrb[0].mxu0
      %v1132 = vpop.f32.mrb[0].mxu0
      %1133 = vdwg.mxu0
      %1135 = vrot.lane.b32.xlu0 %v905, 32
      %v1136 = vpop.permute.xlu0 %1135
      %1139 = vrot.lane.b32.xlu0 %v1017, 64
      %v1140 = vpop.permute.xlu0 %1139
      %1143 = vrot.lane.b32.xlu0 %v1129, 96
      %v1144 = vpop.permute.xlu0 %1143
      %v1146 = vsel %vm685, %v790, %v1136
      %vm1147 = vcmask 523264
      %v1148 = vsel %vm1147, %v1146, %v1140
      %vm1149 = vcmask 785408
      %v1150 = vsel %vm1149, %v1148, %v1144
      %v1151 = vpack.c.bf16 %v1150, %v1150
      %v1152 = vld [vmem:[%s7] sm:$0xf]
      %v1153 = vld [vmem:[%s7 + $0x4] sm:$0xf]
      %v1154 = vld [vmem:[%s7 + $0x8] sm:$0xf]
      %v1155 = vld [vmem:[%s7 + $0xc] sm:$0xf]
      %v1156 = vld [vmem:[%s7 + $0x10] sm:$0xf]
      %v1157 = vld [vmem:[%s7 + $0x14] sm:$0xf]
      %v1158 = vld [vmem:[%s7 + $0x18] sm:$0xf]
      %v1159 = vld [vmem:[%s7 + $0x1c] sm:$0xf]
      %v1160 = vld [vmem:[%s7 + $0x20] sm:$0xf]
      %v1161 = vld [vmem:[%s7 + $0x24] sm:$0xf]
      %v1162 = vld [vmem:[%s7 + $0x28] sm:$0xf]
      %v1163 = vld [vmem:[%s7 + $0x2c] sm:$0xf]
      %v1164 = vld [vmem:[%s7 + $0x30] sm:$0xf]
      %v1165 = vld [vmem:[%s7 + $0x34] sm:$0xf]
      %v1166 = vld [vmem:[%s7 + $0x38] sm:$0xf]
      %v1167 = vld [vmem:[%s7 + $0x3c] sm:$0xf]
      %v1168 = vld [vmem:[%s8] sm:$0x1]
      %v1170 = vlaneseq
      %v1171 = vshrl.u32 %v1170, 7
      %v1172 = vsub.s32 0, %v1171
      %v1173 = vrot.slane %v1168, %v1172
      %v1191 = vunpack.c.l.b16 %v1152
      %v1192 = vunpack.c.l.b16 %v1153
      %v1193 = vunpack.c.l.b16 %v1154
      %v1194 = vunpack.c.l.b16 %v1155
      %v1195 = vunpack.c.l.b16 %v1156
      %v1196 = vunpack.c.l.b16 %v1157
      %v1197 = vunpack.c.l.b16 %v1158
      %v1198 = vunpack.c.l.b16 %v1159
      %v1199 = vunpack.c.l.b16 %v1160
      %v1200 = vunpack.c.l.b16 %v1161
      %v1201 = vunpack.c.l.b16 %v1162
      %v1202 = vunpack.c.l.b16 %v1163
      %v1203 = vunpack.c.l.b16 %v1164
      %v1204 = vunpack.c.l.b16 %v1165
      %v1205 = vunpack.c.l.b16 %v1166
      %v1206 = vunpack.c.l.b16 %v1167
      %v1207 = vpack.c.b16 %v1192, %v1191
      %v1208 = vpack.c.b16 %v1194, %v1193
      %v1209 = vpack.c.b16 %v1196, %v1195
      %v1210 = vpack.c.b16 %v1198, %v1197
      %v1211 = vpack.c.b16 %v1200, %v1199
      %v1212 = vpack.c.b16 %v1202, %v1201
      %v1213 = vpack.c.b16 %v1204, %v1203
      %v1214 = vpack.c.b16 %v1206, %v1205
      %1223 = vmatprep.subr.bf16.mxu0 0
      %1224 = vmatpush1.bf16.msra.mxu0 %v1207
      %1225 = vmatprep.subr.bf16.mxu0 0
      %1226 = vmatpush1.bf16.msra.mxu0 %v1208
      %1227 = vmatprep.subr.bf16.mxu0 0
      %1228 = vmatpush1.bf16.msra.mxu0 %v1209
      %1229 = vmatprep.subr.bf16.mxu0 0
      %1230 = vmatpush1.bf16.msra.mxu0 %v1210
      %1231 = vmatprep.subr.bf16.mxu0 0
      %1232 = vmatpush1.bf16.msra.mxu0 %v1211
      %1233 = vmatprep.subr.bf16.mxu0 0
      %1234 = vmatpush1.bf16.msra.mxu0 %v1212
      %1235 = vmatprep.subr.bf16.mxu0 0
      %1236 = vmatpush1.bf16.msra.mxu0 %v1213
      %1237 = vmatprep.subr.bf16.mxu0 0
      %1238 = vmatpush1.bf16.msra.mxu0 %v1214
      %1239 = vmatprep.subr.bf16.mxu0 0
      %1240 = vmatpush1.bf16.msra.mxu0 0
      %1241 = vmatprep.subr.bf16.mxu0 0
      %1242 = vmatpush1.bf16.msra.mxu0 0
      %1243 = vmatprep.subr.bf16.mxu0 0
      %1244 = vmatpush1.bf16.msra.mxu0 0
      %1245 = vmatprep.subr.bf16.mxu0 0
      %1246 = vmatpush1.bf16.msra.mxu0 0
      %1247 = vmatprep.subr.bf16.mxu0 0
      %1248 = vmatpush1.bf16.msra.mxu0 0
      %1249 = vmatprep.subr.bf16.mxu0 0
      %1250 = vmatpush1.bf16.msra.mxu0 0
      %1251 = vmatprep.subr.bf16.mxu0 0
      %1252 = vmatpush1.bf16.msra.mxu0 0
      %1253 = vmatprep.subr.bf16.mxu0 0
      %1254 = vmatpush1.bf16.msra.mxu0 0
      %1255 = vmatprep.mubr.bf16.mxu0 0
      %1256 = vmatmul.mubr.bf16.gmra.mrb[0].mxu0 %v1151
      %v1257 = vpop.f32.mrb[0].mxu0
      %v1258 = vadd.f32 %v1173, %v1257
      %v1259 = vpop.f32.mrb[0].mxu0
      %v1260 = vpop.f32.mrb[0].mxu0
      %v1261 = vpop.f32.mrb[0].mxu0
      %1262 = vdwg.mxu0
      %v1263 = vadd.f32 %v1258, %v417
      %1264 = vadd.xlane.f32.xlu0 %v1263
      %v1265 = vpop.xlane.xlu0 %1264
      %v1266 = vrcp.pop 128.0
      %v1267 = vmul.f32 %v1265, %v1266
      %v1268 = vsub.f32 %v1263, %v1267
      %v1269 = vmul.f32 %v1268, %v1268
      %1270 = vadd.xlane.f32.xlu0 %v1269
      %v1271 = vpop.xlane.xlu0 %1270
      %v1272 = vmul.f32 %v1271, %v1266
      %v1273 = vadd.f32 %v1272, 1e-12
      %v1274 = vrsqrt.pop %v1273
      %v1275 = vmul.f32 %v1268, %v1274
      %v1276 = vld [vmem:[%s9] sm:$0x1]
      %v1278 = vlaneseq
      %v1279 = vshrl.u32 %v1278, 7
      %v1280 = vsub.s32 0, %v1279
      %v1281 = vrot.slane %v1276, %v1280
      %v1283 = vmul.f32 %v1275, %v1281
      %v1284 = vld [vmem:[%s10] sm:$0x1]
      %v1286 = vlaneseq
      %v1287 = vshrl.u32 %v1286, 7
      %v1288 = vsub.s32 0, %v1287
      %v1289 = vrot.slane %v1284, %v1288
      %v1291 = vadd.f32 %v1283, %v1289
      %1292 = vst [vmem:[%s415] sm:$0xff] %v1291
      %p1293 = scmp.lt.s32.totalorder %s22, 1
      %s1294 = scalar_select %p1293, %s22, 1
      %s1295 = smul.addr %s1294, 8
      %s1296 = scalar_lea.vmem %s11, %s1295
      // Predicated region
      $region65: #{_lambda_.15} parent=63 // pred_check
        %p1297 = pneg %p286
      $region66: #{_lambda_.15} parent=63 // pred_check_branch
        %1299 = sbr.rel (%p1297) target = $region68
      $region67: #{_lambda_.15} parent=63 // pred_region
        _
      $region68: #{_lambda_.15} parent=63 // pred_fallthru
        _
    $region64: #{_lambda_.15} parent=5 // pred_fallthru
      _
    %p1300 = scmp.le.s32.totalorder 2, %s17
    // Predicated region
    $region69: #{_lambda_.15} parent=5 // pred_check
      %p1301 = pneg %p1300
    $region70: #{_lambda_.15} parent=5 // pred_check_branch
      %1303 = sbr.rel (%p1301) target = $region72
    $region71: #{_lambda_.15} parent=5 // pred_region
      %s1304 = ssub.s32 %s17, 2
      // Predicated region
      $region73: #{_lambda_.15} parent=71 // pred_check
        %p1305 = pneg %p292
      $region74: #{_lambda_.15} parent=71 // pred_check_branch
        %1307 = sbr.rel (%p1305) target = $region76
      $region75: #{_lambda_.15} parent=71 // pred_region
        %p1308 = scmp.lt.s32.totalorder %s23, 1
        %s1309 = scalar_select %p1308, %s23, 1
        %s1310 = smul.addr %s1309, 8
        %s1311 = scalar_lea.vmem %s11, %s1310
      $region76: #{_lambda_.15} parent=71 // pred_fallthru
        _
    $region72: #{_lambda_.15} parent=5 // pred_fallthru
      _
  $region6: #{_lambda_.15} parent=0 // loop_footer
    %s21 = sadd.s32 1, %s17
  $region7: #{_lambda_.15} parent=0 // loop_footer_branch
    %16 = sbr.rel target = $region3
  $region8: #{_lambda_.15} parent=0 // loop_exit
    _

</llo_original>
